<compile_context>
chip_gen: v7x
topology: tpu7x:2x2x1
jax: 0.10.0
libtpu: 0.0.40
codegen_flags: <defaults>
</compile_context>

<pallas_src>
import jax
import jax.numpy as jnp
from jax.experimental import pallas as pl
from jax.experimental.pallas import tpu as pltpu


_VMEM_LIMIT_BYTES = 64 * 1024 * 1024  # safe on v5e/v6e (128 MiB) and v7x (64 MiB)


# ----------------------------- Pallas kernels ------------------------------ #

def _matmul_bias_kernel(x_ref, w_ref, b_ref, o_ref):
    # bf16 @ bf16 -> f32 accumulate on the MXU; bias add in f32 on the VPU.
    acc = jnp.dot(x_ref[...], w_ref[...], preferred_element_type=jnp.float32)
    o_ref[...] = acc + b_ref[...]


def _matmul_bn_relu_kernel(x_ref, w_ref, scale_ref, shift_ref, o_ref):
    # bf16 @ bf16 -> f32 accumulate; fused (folded conv-bias + BatchNorm) + ReLU
    # epilogue in f32 (v5e VPU has no bf16).
    acc = jnp.dot(x_ref[...], w_ref[...], preferred_element_type=jnp.float32)
    o_ref[...] = jnp.maximum(acc * scale_ref[...] + shift_ref[...], 0.0)


# --------------------------- Pallas call wrappers --------------------------- #

def _round_up(v, m):
    return (v + m - 1) // m * m


def _pad2(a, rows, cols):
    return jnp.pad(a, ((0, rows - a.shape[0]), (0, cols - a.shape[1])))


def pallas_matmul_bias(cols, w, b, tile_m=512):
    """relu-free: (M,K) @ (K,Nout) + b, bf16 MXU operands, f32 output."""
    M, K = cols.shape
    Nout = w.shape[1]
    Kp = _round_up(K, 128)                 # lane-dense contraction axis
    Np = _round_up(Nout, 128)              # lane-dense output stores
    Mt = min(tile_m, _round_up(M, 128))    # large row tile, (8,128)-aligned
    Mp = _round_up(M, Mt)
    cols_p = _pad2(cols.astype(jnp.bfloat16), Mp, Kp)
    w_p = _pad2(w.astype(jnp.bfloat16), Kp, Np)
    b_p = _pad2(b.reshape(1, Nout).astype(jnp.float32), 1, Np)
    out = pl.pallas_call(
        _matmul_bias_kernel,
        out_shape=jax.ShapeDtypeStruct((Mp, Np), jnp.float32),
        grid=(Mp // Mt,),
        in_specs=[
            pl.BlockSpec((Mt, Kp), lambda i: (i, 0)),
            pl.BlockSpec((Kp, Np), lambda i: (0, 0)),
            pl.BlockSpec((1, Np), lambda i: (0, 0)),
        ],
        out_specs=pl.BlockSpec((Mt, Np), lambda i: (i, 0)),
        compiler_params=pltpu.CompilerParams(
            dimension_semantics=("parallel",),
            vmem_limit_bytes=_VMEM_LIMIT_BYTES),
    )(cols_p, w_p, b_p)
    return out[:M, :Nout]


def pallas_matmul_bn_relu(cols, w, scale, shift, tile_m=512):
    """relu((cols @ w) * scale + shift); conv bias is pre-folded into shift."""
    M, K = cols.shape
    Nout = w.shape[1]
    Kp = _round_up(K, 128)
    Np = _round_up(Nout, 128)
    Mt = min(tile_m, _round_up(M, 128))
    Mp = _round_up(M, Mt)
    # NOTE: for very large K (e.g. 256*9) on v7x, a K grid axis with an f32
    # VMEM accumulator (P3 pattern) would bound the weight block; at FairMOT
    # sizes a single resident (Kp,Np) bf16 weight block fits comfortably.
    cols_p = _pad2(cols.astype(jnp.bfloat16), Mp, Kp)
    w_p = _pad2(w.astype(jnp.bfloat16), Kp, Np)
    scale_p = _pad2(scale.reshape(1, Nout).astype(jnp.float32), 1, Np)
    shift_p = _pad2(shift.reshape(1, Nout).astype(jnp.float32), 1, Np)
    out = pl.pallas_call(
        _matmul_bn_relu_kernel,
        out_shape=jax.ShapeDtypeStruct((Mp, Np), jnp.float32),
        grid=(Mp // Mt,),
        in_specs=[
            pl.BlockSpec((Mt, Kp), lambda i: (i, 0)),
            pl.BlockSpec((Kp, Np), lambda i: (0, 0)),
            pl.BlockSpec((1, Np), lambda i: (0, 0)),
            pl.BlockSpec((1, Np), lambda i: (0, 0)),
        ],
        out_specs=pl.BlockSpec((Mt, Np), lambda i: (i, 0)),
        compiler_params=pltpu.CompilerParams(
            dimension_semantics=("parallel",),
            vmem_limit_bytes=_VMEM_LIMIT_BYTES),
    )(cols_p, w_p, scale_p, shift_p)
    return out[:M, :Nout]


# ------------------------------ JAX glue ----------------------------------- #

def _im2col_3x3(x):
    """Regular 3x3, stride 1, pad 1 im2col, tap-major lanes.

    x: (N,H,W,C) -> (N*H*W, 9*C) with lane index = tap*C + c (no minor-dim
    transpose of the activation tensor).
    """
    N, H, W, C = x.shape
    xp = jnp.pad(x, ((0, 0), (1, 1), (1, 1), (0, 0)))
    taps = [xp[:, i:i + H, j:j + W, :] for i in range(3) for j in range(3)]
    patch = jnp.stack(taps, axis=3)            # (N,H,W,9,C)
    return patch.reshape(N * H * W, 9 * C)


def _weight_tap_major(w):
    """(Nout, Cin, 3, 3) -> (9*Cin, Nout) with row index = tap*Cin + cin."""
    nout, cin = w.shape[0], w.shape[1]
    return jnp.transpose(w.reshape(nout, cin, 9), (2, 1, 0)).reshape(9 * cin, nout)


def _deform_sample(x_bf16, py, px, mask):
    """DCNv2 modulated bilinear sampling -> tap-major im2col matrix.

    x_bf16: (N,H,W,C) bf16; py/px: (N,H,W,9) f32 sample coordinates;
    mask: (N,H,W,9) f32 modulation.  Returns (N*H*W, 9*C) bf16.

    Matches dmcn_im2col_bilinear: samples fully outside (-1, H/W) give 0 and
    each of the 4 corners is zeroed when it falls outside the image.  The
    modulation mask, the range check and the per-corner validity are folded
    into the 4 corner weights; the 4 corner gathers are merged into one gather.
    """
    N, H, W, C = x_bf16.shape
    h_low = jnp.floor(py)
    w_low = jnp.floor(px)
    lh = py - h_low
    lw = px - w_low
    hh = 1.0 - lh
    hw = 1.0 - lw
    in_range = ((py > -1.0) & (px > -1.0) & (py < H) & (px < W)).astype(jnp.float32)
    base = mask * in_range                                               # (N,H,W,9)

    ch = jnp.stack([h_low, h_low, h_low + 1.0, h_low + 1.0], axis=-1)    # (N,H,W,9,4)
    cw = jnp.stack([w_low, w_low + 1.0, w_low, w_low + 1.0], axis=-1)
    wgt = jnp.stack([hh * hw, hh * lw, lh * hw, lh * lw], axis=-1)
    valid = ((ch >= 0.0) & (ch <= H - 1.0) & (cw >= 0.0) & (cw <= W - 1.0))
    wgt = wgt * valid.astype(jnp.float32) * base[..., None]              # fold all scalars

    hc = jnp.clip(ch, 0.0, H - 1.0).astype(jnp.int32)
    wc = jnp.clip(cw, 0.0, W - 1.0).astype(jnp.int32)
    idx = (hc * W + wc).reshape(N, H * W * 9 * 4, 1)
    g = jnp.take_along_axis(x_bf16.reshape(N, H * W, C), idx, axis=1)    # single gather
    g = g.reshape(N, H, W, 9, 4, C)
    val = jnp.sum(wgt[..., None] * g, axis=4)                            # (N,H,W,9,C) f32
    return val.astype(jnp.bfloat16).reshape(N * H * W, 9 * C)            # tap-major


@jax.jit
def _deform_conv_forward(params, x_nchw):
    x = jnp.transpose(x_nchw, (0, 2, 3, 1)).astype(jnp.float32)          # NHWC view
    N, H, W, C = x.shape
    x_bf16 = x.astype(jnp.bfloat16)   # one bf16 copy feeds im2col + gather + MXU

    # ---- offset / mask branch: ordinary 3x3 conv (Pallas matmul + bias) ----
    cols0 = _im2col_3x3(x_bf16)                                          # (N*H*W, 9*C)
    offmask = pallas_matmul_bias(cols0, params["off_w_mat"], params["off_b"])
    # channels are pre-permuted at init: [dy0..8 | dx0..8 | mask0..8] -> contiguous slices
    dy = offmask[:, 0:9].reshape(N, H, W, 9)
    dx = offmask[:, 9:18].reshape(N, H, W, 9)
    mask = jax.nn.sigmoid(offmask[:, 18:27]).reshape(N, H, W, 9)         # modulation

    # ---- deformable sampling positions (3x3, stride 1, pad 1, dil 1) ----
    k_i = jnp.repeat(jnp.arange(3, dtype=jnp.float32), 3)                # tap row
    k_j = jnp.tile(jnp.arange(3, dtype=jnp.float32), 3)                  # tap col
    base_y = (jnp.arange(H, dtype=jnp.float32)[:, None, None] - 1.0
              + k_i[None, None, :])                                      # (H,1,9)
    base_x = (jnp.arange(W, dtype=jnp.float32)[None, :, None] - 1.0
              + k_j[None, None, :])                                      # (1,W,9)
    py = base_y[None] + dy                                               # (N,H,W,9)
    px = base_x[None] + dx

    # TODO(synk): the data-dependent bilinear gather stays in XLA (take_along_axis);
    # there is no clean rectangular-DMA Pallas equivalent.
    cols1 = _deform_sample(x_bf16, py, px, mask)                         # (N*H*W, 9*C)

    # ---- main conv + folded bias/BatchNorm(eval) + ReLU in one Pallas kernel ----
    y = pallas_matmul_bn_relu(cols1, params["w_mat"],
                              params["bn_scale"], params["bn_shift"])
    Cout = params["w_mat"].shape[1]
    y = y.reshape(N, H, W, Cout)
    return jnp.transpose(y, (0, 3, 1, 2))                                # back to NCHW


# ------------------------------ Module ------------------------------------- #

class DeformConvPallas:
    """DCNv2(3x3, s=1, p=1, d=1, dg=1) -> BatchNorm2d(eval) -> ReLU."""

    def __init__(self, in_channels, out_channels, key):
        ks = jax.random.split(key, 6)
        fan_in = in_channels * 9
        std = 1.0 / (fan_in ** 0.5)
        # main deformable-conv parameters (shape as nn.Conv2d weight)
        weight = jax.random.uniform(ks[0], (out_channels, in_channels, 3, 3),
                                    jnp.float32, -std, std)
        bias = jax.random.uniform(ks[1], (out_channels,), jnp.float32, -std, std)
        # conv_offset_mask: Conv2d(in, 3*3*3=27, 3, pad=1).  The PyTorch module
        # zero-inits it; use small random values so the deformable sampling path
        # is actually exercised.
        off_w = 0.1 * jax.random.normal(ks[2], (27, in_channels, 3, 3), jnp.float32)
        off_b = 0.1 * jax.random.normal(ks[3], (27,), jnp.float32)
        # BatchNorm2d(out_channels, momentum=0.1), eval-mode running statistics.
        # TODO(synk): training-mode batch-statistics update is not reproduced.
        bn_gamma = jax.random.uniform(ks[4], (out_channels,), jnp.float32, 0.5, 1.5)
        bn_beta = 0.1 * jax.random.normal(ks[5], (out_channels,), jnp.float32)
        bn_mean = jnp.zeros((out_channels,), jnp.float32)
        bn_var = jnp.ones((out_channels,), jnp.float32)
        eps = 1e-5

        # One-time parameter re-layout (free at runtime):
        #  (a) permute the 27 offset/mask channels from the DCNv2 layout
        #      (offset = cat(o1,o2) interleaved as dy0,dx0,dy1,dx1,...; then mask)
        #      into contiguous blocks [dy0..8 | dx0..8 | mask0..8];
        #  (b) reshape both conv weights to tap-major (9*Cin, Nout) matrices so the
        #      im2col / sampling matrices never need a (9,C) activation transpose;
        #  (c) fold conv bias + BatchNorm into a single scale/shift epilogue.
        perm = jnp.array(list(range(0, 18, 2)) + list(range(1, 18, 2))
                         + list(range(18, 27)), dtype=jnp.int32)
        bn_scale = bn_gamma / jnp.sqrt(bn_var + eps)
        bn_shift = bn_beta - bn_mean * bn_scale + bias * bn_scale
        self.params = {
            "off_w_mat": _weight_tap_major(off_w[perm]),    # (9*Cin, 27)
            "off_b": off_b[perm],                           # (27,)
            "w_mat": _weight_tap_major(weight),             # (9*Cin, Cout)
            "bn_scale": bn_scale,                           # (Cout,)
            "bn_shift": bn_shift,                           # (Cout,)
        }
        self.in_channels = in_channels
        self.out_channels = out_channels

    def __call__(self, x_nchw):
        assert x_nchw.shape[1] == self.in_channels
        return _deform_conv_forward(self.params, x_nchw)


# ------------------------------ Demo ---------------------------------------- #

if __name__ == "__main__":
    key = jax.random.PRNGKey(0)
    k_x, k_p = jax.random.split(key)

    N, Cin, H, W = 2, 4, 16, 16
    Cout = 8
    x = jax.random.normal(k_x, (N, Cin, H, W), jnp.float32)

    mod = DeformConvPallas(Cin, Cout, k_p)
    out = jax.block_until_ready(mod(x))

    assert out.shape == (N, Cout, H, W), out.shape
    assert bool(jnp.all(jnp.isfinite(out)))
    assert bool(jnp.all(out >= 0.0))   # ReLU output
    print("KERNEL_OK")
</pallas_src>

<mosaic_0001>
module attributes {stable_mosaic.version = 11 : i64} {
  func.func @_matmul_bias_kernel(%arg0: i32, %arg1: memref<512x128xbf16, #tpu.memory_space<vmem>>, %arg2: memref<128x128xbf16, #tpu.memory_space<vmem>>, %arg3: memref<1x128xf32, #tpu.memory_space<vmem>>, %arg4: memref<512x128xf32, #tpu.memory_space<vmem>>) attributes {dimension_semantics = [#tpu.dimension_semantics<parallel>], iteration_bounds = array<i64: 1>, scalar_prefetch = 0 : i64, scratch_operands = 0 : i64, tpu.core_type = #tpu.core_type<tc>, window_params = [{transform_indices = @transform_0, window_bounds = array<i64: 512, 128>}, {pipeline_mode = #tpu.pipeline_mode<synchronous>, transform_indices = @transform_1, window_bounds = array<i64: 128, 128>}, {pipeline_mode = #tpu.pipeline_mode<synchronous>, transform_indices = @transform_2, window_bounds = array<i64: 1, 128>}, {transform_indices = @transform_3, window_bounds = array<i64: 512, 128>}]} {
    %c0 = arith.constant 0 : index
    %c0_0 = arith.constant 0 : index
    %0 = vector.load %arg1[%c0, %c0_0] : memref<512x128xbf16, #tpu.memory_space<vmem>>, vector<512x128xbf16>
    %c0_1 = arith.constant 0 : index
    %c0_2 = arith.constant 0 : index
    %1 = vector.load %arg2[%c0_1, %c0_2] : memref<128x128xbf16, #tpu.memory_space<vmem>>, vector<128x128xbf16>
    %cst = arith.constant dense<0.000000e+00> : vector<512x128xf32>
    %2 = tpu.matmul %0, %1, %cst {dimension_numbers = #tpu.dot_dimension_numbers<[1], [0], [0], [1], [0, 0, 1, 1], [], []>} : vector<512x128xbf16>, vector<128x128xbf16>, vector<512x128xf32> -> vector<512x128xf32>
    %c0_3 = arith.constant 0 : index
    %c0_4 = arith.constant 0 : index
    %3 = vector.load %arg3[%c0_3, %c0_4] : memref<1x128xf32, #tpu.memory_space<vmem>>, vector<1x128xf32>
    %4 = vector.broadcast %3 : vector<1x128xf32> to vector<512x128xf32>
    %5 = arith.addf %2, %4 : vector<512x128xf32>
    %c0_5 = arith.constant 0 : index
    %c0_6 = arith.constant 0 : index
    %6 = vector.load %arg4[%c0_5, %c0_6] : memref<512x128xf32, #tpu.memory_space<vmem>>, vector<512x128xf32>
    tpu.vector_store %arg4[%c0_5, %c0_6], %5 {strides = array<i32>} : memref<512x128xf32, #tpu.memory_space<vmem>>, vector<512x128xf32>,
    return
  }
  func.func @transform_0(%arg0: i32) -> (i32, i32) {
    %c0_i32 = arith.constant 0 : i32
    %c0_i32_0 = arith.constant 0 : i32
    return %arg0, %c0_i32 : i32, i32
  }
  func.func @transform_1(%arg0: i32) -> (i32, i32) {
    %c0_i32 = arith.constant 0 : i32
    %c0_i32_0 = arith.constant 0 : i32
    %c0_i32_1 = arith.constant 0 : i32
    return %c0_i32, %c0_i32_0 : i32, i32
  }
  func.func @transform_2(%arg0: i32) -> (i32, i32) {
    %c0_i32 = arith.constant 0 : i32
    %c0_i32_0 = arith.constant 0 : i32
    %c0_i32_1 = arith.constant 0 : i32
    return %c0_i32, %c0_i32_0 : i32, i32
  }
  func.func @transform_3(%arg0: i32) -> (i32, i32) {
    %c0_i32 = arith.constant 0 : i32
    %c0_i32_0 = arith.constant 0 : i32
    return %arg0, %c0_i32 : i32, i32
  }
}

module attributes {stable_mosaic.version = 11 : i64} {
  func.func @_matmul_bn_relu_kernel(%arg0: i32, %arg1: memref<512x128xbf16, #tpu.memory_space<vmem>>, %arg2: memref<128x128xbf16, #tpu.memory_space<vmem>>, %arg3: memref<1x128xf32, #tpu.memory_space<vmem>>, %arg4: memref<1x128xf32, #tpu.memory_space<vmem>>, %arg5: memref<512x128xf32, #tpu.memory_space<vmem>>) attributes {dimension_semantics = [#tpu.dimension_semantics<parallel>], iteration_bounds = array<i64: 1>, scalar_prefetch = 0 : i64, scratch_operands = 0 : i64, tpu.core_type = #tpu.core_type<tc>, window_params = [{transform_indices = @transform_0, window_bounds = array<i64: 512, 128>}, {pipeline_mode = #tpu.pipeline_mode<synchronous>, transform_indices = @transform_1, window_bounds = array<i64: 128, 128>}, {pipeline_mode = #tpu.pipeline_mode<synchronous>, transform_indices = @transform_2, window_bounds = array<i64: 1, 128>}, {pipeline_mode = #tpu.pipeline_mode<synchronous>, transform_indices = @transform_3, window_bounds = array<i64: 1, 128>}, {transform_indices = @transform_4, window_bounds = array<i64: 512, 128>}]} {
    %c0 = arith.constant 0 : index
    %c0_0 = arith.constant 0 : index
    %0 = vector.load %arg1[%c0, %c0_0] : memref<512x128xbf16, #tpu.memory_space<vmem>>, vector<512x128xbf16>
    %c0_1 = arith.constant 0 : index
    %c0_2 = arith.constant 0 : index
    %1 = vector.load %arg2[%c0_1, %c0_2] : memref<128x128xbf16, #tpu.memory_space<vmem>>, vector<128x128xbf16>
    %cst = arith.constant dense<0.000000e+00> : vector<512x128xf32>
    %2 = tpu.matmul %0, %1, %cst {dimension_numbers = #tpu.dot_dimension_numbers<[1], [0], [0], [1], [0, 0, 1, 1], [], []>} : vector<512x128xbf16>, vector<128x128xbf16>, vector<512x128xf32> -> vector<512x128xf32>
    %c0_3 = arith.constant 0 : index
    %c0_4 = arith.constant 0 : index
    %3 = vector.load %arg3[%c0_3, %c0_4] : memref<1x128xf32, #tpu.memory_space<vmem>>, vector<1x128xf32>
    %4 = vector.broadcast %3 : vector<1x128xf32> to vector<512x128xf32>
    %5 = arith.mulf %2, %4 : vector<512x128xf32>
    %c0_5 = arith.constant 0 : index
    %c0_6 = arith.constant 0 : index
    %6 = vector.load %arg4[%c0_5, %c0_6] : memref<1x128xf32, #tpu.memory_space<vmem>>, vector<1x128xf32>
    %7 = vector.broadcast %6 : vector<1x128xf32> to vector<512x128xf32>
    %8 = arith.addf %5, %7 : vector<512x128xf32>
    %cst_7 = arith.constant 0.000000e+00 : f32
    %9 = vector.broadcast %cst_7 : f32 to vector<512x128xf32>
    %10 = arith.maximumf %8, %9 : vector<512x128xf32>
    %c0_8 = arith.constant 0 : index
    %c0_9 = arith.constant 0 : index
    %11 = vector.load %arg5[%c0_8, %c0_9] : memref<512x128xf32, #tpu.memory_space<vmem>>, vector<512x128xf32>
    tpu.vector_store %arg5[%c0_8, %c0_9], %10 {strides = array<i32>} : memref<512x128xf32, #tpu.memory_space<vmem>>, vector<512x128xf32>,
    return
  }
  func.func @transform_0(%arg0: i32) -> (i32, i32) {
    %c0_i32 = arith.constant 0 : i32
    %c0_i32_0 = arith.constant 0 : i32
    return %arg0, %c0_i32 : i32, i32
  }
  func.func @transform_1(%arg0: i32) -> (i32, i32) {
    %c0_i32 = arith.constant 0 : i32
    %c0_i32_0 = arith.constant 0 : i32
    %c0_i32_1 = arith.constant 0 : i32
    return %c0_i32, %c0_i32_0 : i32, i32
  }
  func.func @transform_2(%arg0: i32) -> (i32, i32) {
    %c0_i32 = arith.constant 0 : i32
    %c0_i32_0 = arith.constant 0 : i32
    %c0_i32_1 = arith.constant 0 : i32
    return %c0_i32, %c0_i32_0 : i32, i32
  }
  func.func @transform_3(%arg0: i32) -> (i32, i32) {
    %c0_i32 = arith.constant 0 : i32
    %c0_i32_0 = arith.constant 0 : i32
    %c0_i32_1 = arith.constant 0 : i32
    return %c0_i32, %c0_i32_0 : i32, i32
  }
  func.func @transform_4(%arg0: i32) -> (i32, i32) {
    %c0_i32 = arith.constant 0 : i32
    %c0_i32_0 = arith.constant 0 : i32
    return %arg0, %c0_i32 : i32, i32
  }
}

</mosaic_0001>

<llo_original>
// kernel: _deform_conv_forward.2
$region0: #{_deform_conv_forward.2}
  #allocation0 [shape = 'u32[]', space=smem, size = 0x4, offset = 0x4, fixed_abs, tag = 'smem constant byte address 0x4 - core index']
  #allocation1 [shape = 'u32[144,128]{1,0:T(1,128)}', space=vmem, size = 0x12000, scoped, tag = 'internal scratch']
  %s0 = inlined_call_operand.hbm [shape: bf16[512,128], index: 0, kind: input, shape index: {}]
  %s1 = inlined_call_operand.hbm [shape: bf16[128,128], index: 1, kind: input, shape index: {}]
  %s2 = inlined_call_operand.hbm [shape: f32[1,128], index: 2, kind: input, shape index: {}]
  %s3 = inlined_call_operand.hbm [shape: f32[512,128], index: 3, kind: output, shape index: {}]
  %s4 = sld [smem:[#allocation0]]
  $region34: #{_deform_conv_forward.2} parent=0
    _
  %s6 = ssub.s32 1, %s4
  %s7 = scalar_select 0, %s6, %s4
  $region1: #{_deform_conv_forward.2} parent=0
    #allocation2 [shape = 'u8[131072]{0}', space=vmem, size = 0x20000, scoped, tag = 'input window, operand 0, single buffered']
    #allocation3 [shape = 's32[1]{0}', space=sflag, size = 0x4, scoped, tag = 'scoped memory for _deform_conv_forward.2']
    #allocation4 [shape = 's32[1]{0}', space=sflag, size = 0x4, scoped, tag = 'scoped memory for _deform_conv_forward.2']
    #allocation5 [shape = 'u8[32768]{0}', space=vmem, size = 0x8000, scoped, tag = 'input window, operand 1, single buffered']
    #allocation6 [shape = 's32[1]{0}', space=sflag, size = 0x4, scoped, tag = 'scoped memory for _deform_conv_forward.2']
    #allocation7 [shape = 'u8[512]{0}', space=vmem, size = 0x400, scoped, tag = 'input window, operand 2, single buffered']
    #allocation8 [shape = 'u8[262144]{0}', space=vmem, size = 0x40000, scoped, tag = 'output window, operand 0, single buffered']
    %8 = vsyncpa [#allocation3], 0
    %9 = vsyncpa [#allocation6], 0
    %10 = vsyncpa [#allocation4], 0
    // Predicated region
    $region2: #{_deform_conv_forward.2} parent=1 // pred_check
      _
    $region3: #{_deform_conv_forward.2} parent=1 // pred_check_branch
      %12 = sbr.rel (0) target = $region5
    $region4: #{_deform_conv_forward.2} parent=1 // pred_region
      %s14 = ssub.s32 4096, 4096
      %15 = vsyncadd [#allocation3], %s14
      %s16 = sshll.u32 [#allocation2], 4
      %s17 = int_to_ptr.vmem [resolvable:$true] %s16
      %22 = dma.hbm_to_vmem [thread:$0]  %s0, 4096, %s17, [#allocation3], 64, 64, 4
    $region5: #{_deform_conv_forward.2} parent=1 // pred_fallthru
      _
    // Predicated region
    $region6: #{_deform_conv_forward.2} parent=1 // pred_check
      _
    $region7: #{_deform_conv_forward.2} parent=1 // pred_check_branch
      %24 = sbr.rel (0) target = $region9
    $region8: #{_deform_conv_forward.2} parent=1 // pred_region
      %s26 = ssub.s32 1024, 1024
      %27 = vsyncadd [#allocation6], %s26
      %s28 = sshll.u32 [#allocation5], 4
      %s29 = int_to_ptr.vmem [resolvable:$true] %s28
      %34 = dma.hbm_to_vmem [thread:$0]  %s1, 1024, %s29, [#allocation6], 64, 64, 4
    $region9: #{_deform_conv_forward.2} parent=1 // pred_fallthru
      _
    // Predicated region
    $region10: #{_deform_conv_forward.2} parent=1 // pred_check
      _
    $region11: #{_deform_conv_forward.2} parent=1 // pred_check_branch
      %36 = sbr.rel (0) target = $region13
    $region12: #{_deform_conv_forward.2} parent=1 // pred_region
      %s38 = ssub.s32 16, 16
      %39 = vsyncadd [#allocation6], %s38
      %s41 = sshll.u32 [#allocation7], 4
      %s42 = int_to_ptr.vmem [resolvable:$true] %s41
      %44 = dma.hbm_to_vmem [thread:$0]  %s2, 16, %s42, [#allocation6]
    $region13: #{_deform_conv_forward.2} parent=1 // pred_fallthru
      _
    // Predicated region
    $region14: #{_deform_conv_forward.2} parent=1 // pred_check
      _
    $region15: #{_deform_conv_forward.2} parent=1 // pred_check_branch
      %46 = sbr.rel (0) target = $region17
    $region16: #{_deform_conv_forward.2} parent=1 // pred_region
      %47 = dma.done [#allocation3], 4096
    $region17: #{_deform_conv_forward.2} parent=1 // pred_fallthru
      _
    // Predicated region
    $region18: #{_deform_conv_forward.2} parent=1 // pred_check
      _
    $region19: #{_deform_conv_forward.2} parent=1 // pred_check_branch
      %49 = sbr.rel (0) target = $region21
    $region20: #{_deform_conv_forward.2} parent=1 // pred_region
      %50 = dma.done [#allocation6], 1024
    $region21: #{_deform_conv_forward.2} parent=1 // pred_fallthru
      _
    // Predicated region
    $region22: #{_deform_conv_forward.2} parent=1 // pred_check
      _
    $region23: #{_deform_conv_forward.2} parent=1 // pred_check_branch
      %52 = sbr.rel (0) target = $region25
    $region24: #{_deform_conv_forward.2} parent=1 // pred_region
      %53 = dma.done [#allocation6], 16
    $region25: #{_deform_conv_forward.2} parent=1 // pred_fallthru
      _
    %v55 = vld [vmem:[#allocation2] sm:$0xf]
    %v56 = vld [vmem:[#allocation2 + $0x4] sm:$0xf]
    %v57 = vld [vmem:[#allocation2 + $0x8] sm:$0xf]
    %v58 = vld [vmem:[#allocation2 + $0xc] sm:$0xf]
    %v59 = vld [vmem:[#allocation2 + $0x10] sm:$0xf]
    %v60 = vld [vmem:[#allocation2 + $0x14] sm:$0xf]
    %v61 = vld [vmem:[#allocation2 + $0x18] sm:$0xf]
    %v62 = vld [vmem:[#allocation2 + $0x1c] sm:$0xf]
    %v63 = vld [vmem:[#allocation2 + $0x20] sm:$0xf]
    %v64 = vld [vmem:[#allocation2 + $0x24] sm:$0xf]
    %v65 = vld [vmem:[#allocation2 + $0x28] sm:$0xf]
    %v66 = vld [vmem:[#allocation2 + $0x2c] sm:$0xf]
    %v67 = vld [vmem:[#allocation2 + $0x30] sm:$0xf]
    %v68 = vld [vmem:[#allocation2 + $0x34] sm:$0xf]
    %v69 = vld [vmem:[#allocation2 + $0x38] sm:$0xf]
    %v70 = vld [vmem:[#allocation2 + $0x3c] sm:$0xf]
    %v71 = vld [vmem:[#allocation2 + $0x40] sm:$0xf]
    %v72 = vld [vmem:[#allocation2 + $0x44] sm:$0xf]
    %v73 = vld [vmem:[#allocation2 + $0x48] sm:$0xf]
    %v74 = vld [vmem:[#allocation2 + $0x4c] sm:$0xf]
    %v75 = vld [vmem:[#allocation2 + $0x50] sm:$0xf]
    %v76 = vld [vmem:[#allocation2 + $0x54] sm:$0xf]
    %v77 = vld [vmem:[#allocation2 + $0x58] sm:$0xf]
    %v78 = vld [vmem:[#allocation2 + $0x5c] sm:$0xf]
    %v79 = vld [vmem:[#allocation2 + $0x60] sm:$0xf]
    %v80 = vld [vmem:[#allocation2 + $0x64] sm:$0xf]
    %v81 = vld [vmem:[#allocation2 + $0x68] sm:$0xf]
    %v82 = vld [vmem:[#allocation2 + $0x6c] sm:$0xf]
    %v83 = vld [vmem:[#allocation2 + $0x70] sm:$0xf]
    %v84 = vld [vmem:[#allocation2 + $0x74] sm:$0xf]
    %v85 = vld [vmem:[#allocation2 + $0x78] sm:$0xf]
    %v86 = vld [vmem:[#allocation2 + $0x7c] sm:$0xf]
    %v87 = vld [vmem:[#allocation2 + $0x80] sm:$0xf]
    %v88 = vld [vmem:[#allocation2 + $0x84] sm:$0xf]
    %v89 = vld [vmem:[#allocation2 + $0x88] sm:$0xf]
    %v90 = vld [vmem:[#allocation2 + $0x8c] sm:$0xf]
    %v91 = vld [vmem:[#allocation2 + $0x90] sm:$0xf]
    %v92 = vld [vmem:[#allocation2 + $0x94] sm:$0xf]
    %v93 = vld [vmem:[#allocation2 + $0x98] sm:$0xf]
    %v94 = vld [vmem:[#allocation2 + $0x9c] sm:$0xf]
    %v95 = vld [vmem:[#allocation2 + $0xa0] sm:$0xf]
    %v96 = vld [vmem:[#allocation2 + $0xa4] sm:$0xf]
    %v97 = vld [vmem:[#allocation2 + $0xa8] sm:$0xf]
    %v98 = vld [vmem:[#allocation2 + $0xac] sm:$0xf]
    %v99 = vld [vmem:[#allocation2 + $0xb0] sm:$0xf]
    %v100 = vld [vmem:[#allocation2 + $0xb4] sm:$0xf]
    %v101 = vld [vmem:[#allocation2 + $0xb8] sm:$0xf]
    %v102 = vld [vmem:[#allocation2 + $0xbc] sm:$0xf]
    %v103 = vld [vmem:[#allocation2 + $0xc0] sm:$0xf]
    %v104 = vld [vmem:[#allocation2 + $0xc4] sm:$0xf]
    %v105 = vld [vmem:[#allocation2 + $0xc8] sm:$0xf]
    %v106 = vld [vmem:[#allocation2 + $0xcc] sm:$0xf]
    %v107 = vld [vmem:[#allocation2 + $0xd0] sm:$0xf]
    %v108 = vld [vmem:[#allocation2 + $0xd4] sm:$0xf]
    %v109 = vld [vmem:[#allocation2 + $0xd8] sm:$0xf]
    %v110 = vld [vmem:[#allocation2 + $0xdc] sm:$0xf]
    %v111 = vld [vmem:[#allocation2 + $0xe0] sm:$0xf]
    %v112 = vld [vmem:[#allocation2 + $0xe4] sm:$0xf]
    %v113 = vld [vmem:[#allocation2 + $0xe8] sm:$0xf]
    %v114 = vld [vmem:[#allocation2 + $0xec] sm:$0xf]
    %v115 = vld [vmem:[#allocation2 + $0xf0] sm:$0xf]
    %v116 = vld [vmem:[#allocation2 + $0xf4] sm:$0xf]
    %v117 = vld [vmem:[#allocation2 + $0xf8] sm:$0xf]
    %v118 = vld [vmem:[#allocation2 + $0xfc] sm:$0xf]
    %v119 = vld [vmem:[#allocation5] sm:$0xf]
    %v120 = vld [vmem:[#allocation5 + $0x4] sm:$0xf]
    %v121 = vld [vmem:[#allocation5 + $0x8] sm:$0xf]
    %v122 = vld [vmem:[#allocation5 + $0xc] sm:$0xf]
    %v123 = vld [vmem:[#allocation5 + $0x10] sm:$0xf]
    %v124 = vld [vmem:[#allocation5 + $0x14] sm:$0xf]
    %v125 = vld [vmem:[#allocation5 + $0x18] sm:$0xf]
    %v126 = vld [vmem:[#allocation5 + $0x1c] sm:$0xf]
    %v127 = vld [vmem:[#allocation5 + $0x20] sm:$0xf]
    %v128 = vld [vmem:[#allocation5 + $0x24] sm:$0xf]
    %v129 = vld [vmem:[#allocation5 + $0x28] sm:$0xf]
    %v130 = vld [vmem:[#allocation5 + $0x2c] sm:$0xf]
    %v131 = vld [vmem:[#allocation5 + $0x30] sm:$0xf]
    %v132 = vld [vmem:[#allocation5 + $0x34] sm:$0xf]
    %v133 = vld [vmem:[#allocation5 + $0x38] sm:$0xf]
    %v134 = vld [vmem:[#allocation5 + $0x3c] sm:$0xf]
    %v135 = vld [vmem:[#allocation7] sm:$0x1]
    %v137 = vlaneseq
    %v138 = vshrl.u32 %v137, 7
    %v139 = vsub.s32 0, %v138
    %v140 = vrot.slane %v135, %v139
    %v206 = vunpack.c.l.b16 %v55
    %v207 = vunpack.c.l.b16 %v56
    %v208 = vunpack.c.l.b16 %v57
    %v209 = vunpack.c.l.b16 %v58
    %v210 = vunpack.c.l.b16 %v59
    %v211 = vunpack.c.l.b16 %v60
    %v212 = vunpack.c.l.b16 %v61
    %v213 = vunpack.c.l.b16 %v62
    %v214 = vunpack.c.l.b16 %v63
    %v215 = vunpack.c.l.b16 %v64
    %v216 = vunpack.c.l.b16 %v65
    %v217 = vunpack.c.l.b16 %v66
    %v218 = vunpack.c.l.b16 %v67
    %v219 = vunpack.c.l.b16 %v68
    %v220 = vunpack.c.l.b16 %v69
    %v221 = vunpack.c.l.b16 %v70
    %v222 = vunpack.c.l.b16 %v71
    %v223 = vunpack.c.l.b16 %v72
    %v224 = vunpack.c.l.b16 %v73
    %v225 = vunpack.c.l.b16 %v74
    %v226 = vunpack.c.l.b16 %v75
    %v227 = vunpack.c.l.b16 %v76
    %v228 = vunpack.c.l.b16 %v77
    %v229 = vunpack.c.l.b16 %v78
    %v230 = vunpack.c.l.b16 %v79
    %v231 = vunpack.c.l.b16 %v80
    %v232 = vunpack.c.l.b16 %v81
    %v233 = vunpack.c.l.b16 %v82
    %v234 = vunpack.c.l.b16 %v83
    %v235 = vunpack.c.l.b16 %v84
    %v236 = vunpack.c.l.b16 %v85
    %v237 = vunpack.c.l.b16 %v86
    %v238 = vunpack.c.l.b16 %v87
    %v239 = vunpack.c.l.b16 %v88
    %v240 = vunpack.c.l.b16 %v89
    %v241 = vunpack.c.l.b16 %v90
    %v242 = vunpack.c.l.b16 %v91
    %v243 = vunpack.c.l.b16 %v92
    %v244 = vunpack.c.l.b16 %v93
    %v245 = vunpack.c.l.b16 %v94
    %v246 = vunpack.c.l.b16 %v95
    %v247 = vunpack.c.l.b16 %v96
    %v248 = vunpack.c.l.b16 %v97
    %v249 = vunpack.c.l.b16 %v98
    %v250 = vunpack.c.l.b16 %v99
    %v251 = vunpack.c.l.b16 %v100
    %v252 = vunpack.c.l.b16 %v101
    %v253 = vunpack.c.l.b16 %v102
    %v254 = vunpack.c.l.b16 %v103
    %v255 = vunpack.c.l.b16 %v104
    %v256 = vunpack.c.l.b16 %v105
    %v257 = vunpack.c.l.b16 %v106
    %v258 = vunpack.c.l.b16 %v107
    %v259 = vunpack.c.l.b16 %v108
    %v260 = vunpack.c.l.b16 %v109
    %v261 = vunpack.c.l.b16 %v110
    %v262 = vunpack.c.l.b16 %v111
    %v263 = vunpack.c.l.b16 %v112
    %v264 = vunpack.c.l.b16 %v113
    %v265 = vunpack.c.l.b16 %v114
    %v266 = vunpack.c.l.b16 %v115
    %v267 = vunpack.c.l.b16 %v116
    %v268 = vunpack.c.l.b16 %v117
    %v269 = vunpack.c.l.b16 %v118
    %v270 = vpack.c.b16 %v207, %v206
    %v271 = vpack.c.b16 %v209, %v208
    %v272 = vpack.c.b16 %v211, %v210
    %v273 = vpack.c.b16 %v213, %v212
    %v274 = vpack.c.b16 %v215, %v214
    %v275 = vpack.c.b16 %v217, %v216
    %v276 = vpack.c.b16 %v219, %v218
    %v277 = vpack.c.b16 %v221, %v220
    %v278 = vpack.c.b16 %v223, %v222
    %v279 = vpack.c.b16 %v225, %v224
    %v280 = vpack.c.b16 %v227, %v226
    %v281 = vpack.c.b16 %v229, %v228
    %v282 = vpack.c.b16 %v231, %v230
    %v283 = vpack.c.b16 %v233, %v232
    %v284 = vpack.c.b16 %v235, %v234
    %v285 = vpack.c.b16 %v237, %v236
    %v286 = vpack.c.b16 %v239, %v238
    %v287 = vpack.c.b16 %v241, %v240
    %v288 = vpack.c.b16 %v243, %v242
    %v289 = vpack.c.b16 %v245, %v244
    %v290 = vpack.c.b16 %v247, %v246
    %v291 = vpack.c.b16 %v249, %v248
    %v292 = vpack.c.b16 %v251, %v250
    %v293 = vpack.c.b16 %v253, %v252
    %v294 = vpack.c.b16 %v255, %v254
    %v295 = vpack.c.b16 %v257, %v256
    %v296 = vpack.c.b16 %v259, %v258
    %v297 = vpack.c.b16 %v261, %v260
    %v298 = vpack.c.b16 %v263, %v262
    %v299 = vpack.c.b16 %v265, %v264
    %v300 = vpack.c.b16 %v267, %v266
    %v301 = vpack.c.b16 %v269, %v268
    %v350 = vunpack.c.l.b16 %v119
    %v351 = vunpack.c.l.b16 %v120
    %v352 = vunpack.c.l.b16 %v121
    %v353 = vunpack.c.l.b16 %v122
    %v354 = vunpack.c.l.b16 %v123
    %v355 = vunpack.c.l.b16 %v124
    %v356 = vunpack.c.l.b16 %v125
    %v357 = vunpack.c.l.b16 %v126
    %v358 = vunpack.c.l.b16 %v127
    %v359 = vunpack.c.l.b16 %v128
    %v360 = vunpack.c.l.b16 %v129
    %v361 = vunpack.c.l.b16 %v130
    %v362 = vunpack.c.l.b16 %v131
    %v363 = vunpack.c.l.b16 %v132
    %v364 = vunpack.c.l.b16 %v133
    %v365 = vunpack.c.l.b16 %v134
    %v366 = vpack.c.b16 %v351, %v350
    %v367 = vpack.c.b16 %v353, %v352
    %v368 = vpack.c.b16 %v355, %v354
    %v369 = vpack.c.b16 %v357, %v356
    %v370 = vpack.c.b16 %v359, %v358
    %v371 = vpack.c.b16 %v361, %v360
    %v372 = vpack.c.b16 %v363, %v362
    %v373 = vpack.c.b16 %v365, %v364
    %382 = vmatprep.subr.bf16.mxu0 0
    %383 = vmatpush1.bf16.msra.mxu0 %v366
    %384 = vmatprep.subr.bf16.mxu0 0
    %385 = vmatpush1.bf16.msra.mxu0 %v367
    %386 = vmatprep.subr.bf16.mxu0 0
    %387 = vmatpush1.bf16.msra.mxu0 %v368
    %388 = vmatprep.subr.bf16.mxu0 0
    %389 = vmatpush1.bf16.msra.mxu0 %v369
    %390 = vmatprep.subr.bf16.mxu0 0
    %391 = vmatpush1.bf16.msra.mxu0 %v370
    %392 = vmatprep.subr.bf16.mxu0 0
    %393 = vmatpush1.bf16.msra.mxu0 %v371
    %394 = vmatprep.subr.bf16.mxu0 0
    %395 = vmatpush1.bf16.msra.mxu0 %v372
    %396 = vmatprep.subr.bf16.mxu0 0
    %397 = vmatpush1.bf16.msra.mxu0 %v373
    %398 = vmatprep.subr.bf16.mxu0 0
    %399 = vmatpush1.bf16.msra.mxu0 0
    %400 = vmatprep.subr.bf16.mxu0 0
    %401 = vmatpush1.bf16.msra.mxu0 0
    %402 = vmatprep.subr.bf16.mxu0 0
    %403 = vmatpush1.bf16.msra.mxu0 0
    %404 = vmatprep.subr.bf16.mxu0 0
    %405 = vmatpush1.bf16.msra.mxu0 0
    %406 = vmatprep.subr.bf16.mxu0 0
    %407 = vmatpush1.bf16.msra.mxu0 0
    %408 = vmatprep.subr.bf16.mxu0 0
    %409 = vmatpush1.bf16.msra.mxu0 0
    %410 = vmatprep.subr.bf16.mxu0 0
    %411 = vmatpush1.bf16.msra.mxu0 0
    %412 = vmatprep.subr.bf16.mxu0 0
    %413 = vmatpush1.bf16.msra.mxu0 0
    %414 = vmatprep.mubr.bf16.mxu0 0
    %415 = vmatmul.mubr.bf16.gmra.mrb[0].mxu0 %v270
    %v416 = vpop.f32.mrb[0].mxu0
    %v417 = vadd.f32 %v140, %v416
    %v418 = vpop.f32.mrb[0].mxu0
    %v419 = vpop.f32.mrb[0].mxu0
    %v420 = vadd.f32 %v140, %v419
    %v421 = vpop.f32.mrb[0].mxu0
    %422 = vmatprep.mubr.bf16.mxu0 0
    %423 = vmatmul.mubr.bf16.gmra.mrb[0].mxu0 %v271
    %v424 = vpop.f32.mrb[0].mxu0
    %v425 = vadd.f32 %v140, %v424
    %v426 = vpop.f32.mrb[0].mxu0
    %v427 = vpop.f32.mrb[0].mxu0
    %v428 = vadd.f32 %v140, %v427
    %v429 = vpop.f32.mrb[0].mxu0
    %430 = vmatprep.mubr.bf16.mxu0 0
    %431 = vmatmul.mubr.bf16.gmra.mrb[0].mxu0 %v272
    %v432 = vpop.f32.mrb[0].mxu0
    %v433 = vadd.f32 %v140, %v432
    %v434 = vpop.f32.mrb[0].mxu0
    %v435 = vpop.f32.mrb[0].mxu0
    %v436 = vadd.f32 %v140, %v435
    %v437 = vpop.f32.mrb[0].mxu0
    %438 = vmatprep.mubr.bf16.mxu0 0
    %439 = vmatmul.mubr.bf16.gmra.mrb[0].mxu0 %v273
    %v440 = vpop.f32.mrb[0].mxu0
    %v441 = vadd.f32 %v140, %v440
    %v442 = vpop.f32.mrb[0].mxu0
    %v443 = vpop.f32.mrb[0].mxu0
    %v444 = vadd.f32 %v140, %v443
    %v445 = vpop.f32.mrb[0].mxu0
    %446 = vmatprep.mubr.bf16.mxu0 0
    %447 = vmatmul.mubr.bf16.gmra.mrb[0].mxu0 %v274
    %v448 = vpop.f32.mrb[0].mxu0
    %v449 = vadd.f32 %v140, %v448
    %v450 = vpop.f32.mrb[0].mxu0
    %v451 = vpop.f32.mrb[0].mxu0
    %v452 = vadd.f32 %v140, %v451
    %v453 = vpop.f32.mrb[0].mxu0
    %454 = vmatprep.mubr.bf16.mxu0 0
    %455 = vmatmul.mubr.bf16.gmra.mrb[0].mxu0 %v275
    %v456 = vpop.f32.mrb[0].mxu0
    %v457 = vadd.f32 %v140, %v456
    %v458 = vpop.f32.mrb[0].mxu0
    %v459 = vpop.f32.mrb[0].mxu0
    %v460 = vadd.f32 %v140, %v459
    %v461 = vpop.f32.mrb[0].mxu0
    %462 = vmatprep.mubr.bf16.mxu0 0
    %463 = vmatmul.mubr.bf16.gmra.mrb[0].mxu0 %v276
    %v464 = vpop.f32.mrb[0].mxu0
    %v465 = vadd.f32 %v140, %v464
    %v466 = vpop.f32.mrb[0].mxu0
    %v467 = vpop.f32.mrb[0].mxu0
    %v468 = vadd.f32 %v140, %v467
    %v469 = vpop.f32.mrb[0].mxu0
    %470 = vmatprep.mubr.bf16.mxu0 0
    %471 = vmatmul.mubr.bf16.gmra.mrb[0].mxu0 %v277
    %v472 = vpop.f32.mrb[0].mxu0
    %v473 = vadd.f32 %v140, %v472
    %v474 = vpop.f32.mrb[0].mxu0
    %v475 = vpop.f32.mrb[0].mxu0
    %v476 = vadd.f32 %v140, %v475
    %v477 = vpop.f32.mrb[0].mxu0
    %478 = vmatprep.mubr.bf16.mxu0 0
    %479 = vmatmul.mubr.bf16.gmra.mrb[0].mxu0 %v278
    %v480 = vpop.f32.mrb[0].mxu0
    %v481 = vadd.f32 %v140, %v480
    %v482 = vpop.f32.mrb[0].mxu0
    %v483 = vpop.f32.mrb[0].mxu0
    %v484 = vadd.f32 %v140, %v483
    %v485 = vpop.f32.mrb[0].mxu0
    %486 = vmatprep.mubr.bf16.mxu0 0
    %487 = vmatmul.mubr.bf16.gmra.mrb[0].mxu0 %v279
    %v488 = vpop.f32.mrb[0].mxu0
    %v489 = vadd.f32 %v140, %v488
    %v490 = vpop.f32.mrb[0].mxu0
    %v491 = vpop.f32.mrb[0].mxu0
    %v492 = vadd.f32 %v140, %v491
    %v493 = vpop.f32.mrb[0].mxu0
    %494 = vmatprep.mubr.bf16.mxu0 0
    %495 = vmatmul.mubr.bf16.gmra.mrb[0].mxu0 %v280
    %v496 = vpop.f32.mrb[0].mxu0
    %v497 = vadd.f32 %v140, %v496
    %v498 = vpop.f32.mrb[0].mxu0
    %v499 = vpop.f32.mrb[0].mxu0
    %v500 = vadd.f32 %v140, %v499
    %v501 = vpop.f32.mrb[0].mxu0
    %502 = vmatprep.mubr.bf16.mxu0 0
    %503 = vmatmul.mubr.bf16.gmra.mrb[0].mxu0 %v281
    %v504 = vpop.f32.mrb[0].mxu0
    %v505 = vadd.f32 %v140, %v504
    %v506 = vpop.f32.mrb[0].mxu0
    %v507 = vpop.f32.mrb[0].mxu0
    %v508 = vadd.f32 %v140, %v507
    %v509 = vpop.f32.mrb[0].mxu0
    %510 = vmatprep.mubr.bf16.mxu0 0
    %511 = vmatmul.mubr.bf16.gmra.mrb[0].mxu0 %v282
    %v512 = vpop.f32.mrb[0].mxu0
    %v513 = vadd.f32 %v140, %v512
    %v514 = vpop.f32.mrb[0].mxu0
    %v515 = vpop.f32.mrb[0].mxu0
    %v516 = vadd.f32 %v140, %v515
    %v517 = vpop.f32.mrb[0].mxu0
    %518 = vmatprep.mubr.bf16.mxu0 0
    %519 = vmatmul.mubr.bf16.gmra.mrb[0].mxu0 %v283
    %v520 = vpop.f32.mrb[0].mxu0
    %v521 = vadd.f32 %v140, %v520
    %v522 = vpop.f32.mrb[0].mxu0
    %v523 = vpop.f32.mrb[0].mxu0
    %v524 = vadd.f32 %v140, %v523
    %v525 = vpop.f32.mrb[0].mxu0
    %526 = vmatprep.mubr.bf16.mxu0 0
    %527 = vmatmul.mubr.bf16.gmra.mrb[0].mxu0 %v284
    %v528 = vpop.f32.mrb[0].mxu0
    %v529 = vadd.f32 %v140, %v528
    %v530 = vpop.f32.mrb[0].mxu0
    %v531 = vpop.f32.mrb[0].mxu0
    %v532 = vadd.f32 %v140, %v531
    %v533 = vpop.f32.mrb[0].mxu0
    %534 = vmatprep.mubr.bf16.mxu0 0
    %535 = vmatmul.mubr.bf16.gmra.mrb[0].mxu0 %v285
    %v536 = vpop.f32.mrb[0].mxu0
    %v537 = vadd.f32 %v140, %v536
    %v538 = vpop.f32.mrb[0].mxu0
    %v539 = vpop.f32.mrb[0].mxu0
    %v540 = vadd.f32 %v140, %v539
    %v541 = vpop.f32.mrb[0].mxu0
    %542 = vmatprep.mubr.bf16.mxu0 0
    %543 = vmatmul.mubr.bf16.gmra.mrb[0].mxu0 %v286
    %v544 = vpop.f32.mrb[0].mxu0
    %v545 = vadd.f32 %v140, %v544
    %v546 = vpop.f32.mrb[0].mxu0
    %v547 = vpop.f32.mrb[0].mxu0
    %v548 = vadd.f32 %v140, %v547
    %v549 = vpop.f32.mrb[0].mxu0
    %550 = vmatprep.mubr.bf16.mxu0 0
    %551 = vmatmul.mubr.bf16.gmra.mrb[0].mxu0 %v287
    %v552 = vpop.f32.mrb[0].mxu0
    %v553 = vadd.f32 %v140, %v552
    %v554 = vpop.f32.mrb[0].mxu0
    %v555 = vpop.f32.mrb[0].mxu0
    %v556 = vadd.f32 %v140, %v555
    %v557 = vpop.f32.mrb[0].mxu0
    %558 = vmatprep.mubr.bf16.mxu0 0
    %559 = vmatmul.mubr.bf16.gmra.mrb[0].mxu0 %v288
    %v560 = vpop.f32.mrb[0].mxu0
    %v561 = vadd.f32 %v140, %v560
    %v562 = vpop.f32.mrb[0].mxu0
    %v563 = vpop.f32.mrb[0].mxu0
    %v564 = vadd.f32 %v140, %v563
    %v565 = vpop.f32.mrb[0].mxu0
    %566 = vmatprep.mubr.bf16.mxu0 0
    %567 = vmatmul.mubr.bf16.gmra.mrb[0].mxu0 %v289
    %v568 = vpop.f32.mrb[0].mxu0
    %v569 = vadd.f32 %v140, %v568
    %v570 = vpop.f32.mrb[0].mxu0
    %v571 = vpop.f32.mrb[0].mxu0
    %v572 = vadd.f32 %v140, %v571
    %v573 = vpop.f32.mrb[0].mxu0
    %574 = vmatprep.mubr.bf16.mxu0 0
    %575 = vmatmul.mubr.bf16.gmra.mrb[0].mxu0 %v290
    %v576 = vpop.f32.mrb[0].mxu0
    %v577 = vadd.f32 %v140, %v576
    %v578 = vpop.f32.mrb[0].mxu0
    %v579 = vpop.f32.mrb[0].mxu0
    %v580 = vadd.f32 %v140, %v579
    %v581 = vpop.f32.mrb[0].mxu0
    %582 = vmatprep.mubr.bf16.mxu0 0
    %583 = vmatmul.mubr.bf16.gmra.mrb[0].mxu0 %v291
    %v584 = vpop.f32.mrb[0].mxu0
    %v585 = vadd.f32 %v140, %v584
    %v586 = vpop.f32.mrb[0].mxu0
    %v587 = vpop.f32.mrb[0].mxu0
    %v588 = vadd.f32 %v140, %v587
    %v589 = vpop.f32.mrb[0].mxu0
    %590 = vmatprep.mubr.bf16.mxu0 0
    %591 = vmatmul.mubr.bf16.gmra.mrb[0].mxu0 %v292
    %v592 = vpop.f32.mrb[0].mxu0
    %v593 = vadd.f32 %v140, %v592
    %v594 = vpop.f32.mrb[0].mxu0
    %v595 = vpop.f32.mrb[0].mxu0
    %v596 = vadd.f32 %v140, %v595
    %v597 = vpop.f32.mrb[0].mxu0
    %598 = vmatprep.mubr.bf16.mxu0 0
    %599 = vmatmul.mubr.bf16.gmra.mrb[0].mxu0 %v293
    %v600 = vpop.f32.mrb[0].mxu0
    %v601 = vadd.f32 %v140, %v600
    %v602 = vpop.f32.mrb[0].mxu0
    %v603 = vpop.f32.mrb[0].mxu0
    %v604 = vadd.f32 %v140, %v603
    %v605 = vpop.f32.mrb[0].mxu0
    %606 = vmatprep.mubr.bf16.mxu0 0
    %607 = vmatmul.mubr.bf16.gmra.mrb[0].mxu0 %v294
    %v608 = vpop.f32.mrb[0].mxu0
    %v609 = vadd.f32 %v140, %v608
    %v610 = vpop.f32.mrb[0].mxu0
    %v611 = vpop.f32.mrb[0].mxu0
    %v612 = vadd.f32 %v140, %v611
    %v613 = vpop.f32.mrb[0].mxu0
    %614 = vmatprep.mubr.bf16.mxu0 0
    %615 = vmatmul.mubr.bf16.gmra.mrb[0].mxu0 %v295
    %v616 = vpop.f32.mrb[0].mxu0
    %v617 = vadd.f32 %v140, %v616
    %v618 = vpop.f32.mrb[0].mxu0
    %v619 = vpop.f32.mrb[0].mxu0
    %v620 = vadd.f32 %v140, %v619
    %v621 = vpop.f32.mrb[0].mxu0
    %622 = vmatprep.mubr.bf16.mxu0 0
    %623 = vmatmul.mubr.bf16.gmra.mrb[0].mxu0 %v296
    %v624 = vpop.f32.mrb[0].mxu0
    %v625 = vadd.f32 %v140, %v624
    %v626 = vpop.f32.mrb[0].mxu0
    %v627 = vpop.f32.mrb[0].mxu0
    %v628 = vadd.f32 %v140, %v627
    %v629 = vpop.f32.mrb[0].mxu0
    %630 = vmatprep.mubr.bf16.mxu0 0
    %631 = vmatmul.mubr.bf16.gmra.mrb[0].mxu0 %v297
    %v632 = vpop.f32.mrb[0].mxu0
    %v633 = vadd.f32 %v140, %v632
    %v634 = vpop.f32.mrb[0].mxu0
    %v635 = vpop.f32.mrb[0].mxu0
    %v636 = vadd.f32 %v140, %v635
    %v637 = vpop.f32.mrb[0].mxu0
    %638 = vmatprep.mubr.bf16.mxu0 0
    %639 = vmatmul.mubr.bf16.gmra.mrb[0].mxu0 %v298
    %v640 = vpop.f32.mrb[0].mxu0
    %v641 = vadd.f32 %v140, %v640
    %v642 = vpop.f32.mrb[0].mxu0
    %v643 = vpop.f32.mrb[0].mxu0
    %v644 = vadd.f32 %v140, %v643
    %v645 = vpop.f32.mrb[0].mxu0
    %646 = vmatprep.mubr.bf16.mxu0 0
    %647 = vmatmul.mubr.bf16.gmra.mrb[0].mxu0 %v299
    %v648 = vpop.f32.mrb[0].mxu0
    %v649 = vadd.f32 %v140, %v648
    %v650 = vpop.f32.mrb[0].mxu0
    %v651 = vpop.f32.mrb[0].mxu0
    %v652 = vadd.f32 %v140, %v651
    %v653 = vpop.f32.mrb[0].mxu0
    %654 = vmatprep.mubr.bf16.mxu0 0
    %655 = vmatmul.mubr.bf16.gmra.mrb[0].mxu0 %v300
    %v656 = vpop.f32.mrb[0].mxu0
    %v657 = vadd.f32 %v140, %v656
    %v658 = vpop.f32.mrb[0].mxu0
    %v659 = vpop.f32.mrb[0].mxu0
    %v660 = vadd.f32 %v140, %v659
    %v661 = vpop.f32.mrb[0].mxu0
    %662 = vmatprep.mubr.bf16.mxu0 0
    %663 = vmatmul.mubr.bf16.gmra.mrb[0].mxu0 %v301
    %v664 = vpop.f32.mrb[0].mxu0
    %v665 = vadd.f32 %v140, %v664
    %v666 = vpop.f32.mrb[0].mxu0
    %v667 = vpop.f32.mrb[0].mxu0
    %v668 = vadd.f32 %v140, %v667
    %v669 = vpop.f32.mrb[0].mxu0
    %670 = vdwg.mxu0
    %671 = vst [vmem:[#allocation8] sm:$0xff] %v417
    %672 = vst [vmem:[#allocation8 + $0x8] sm:$0xff] %v420
    %673 = vst [vmem:[#allocation8 + $0x10] sm:$0xff] %v425
    %674 = vst [vmem:[#allocation8 + $0x18] sm:$0xff] %v428
    %675 = vst [vmem:[#allocation8 + $0x20] sm:$0xff] %v433
    %676 = vst [vmem:[#allocation8 + $0x28] sm:$0xff] %v436
    %677 = vst [vmem:[#allocation8 + $0x30] sm:$0xff] %v441
    %678 = vst [vmem:[#allocation8 + $0x38] sm:$0xff] %v444
    %679 = vst [vmem:[#allocation8 + $0x40] sm:$0xff] %v449
    %680 = vst [vmem:[#allocation8 + $0x48] sm:$0xff] %v452
    %681 = vst [vmem:[#allocation8 + $0x50] sm:$0xff] %v457
    %682 = vst [vmem:[#allocation8 + $0x58] sm:$0xff] %v460
    %683 = vst [vmem:[#allocation8 + $0x60] sm:$0xff] %v465
    %684 = vst [vmem:[#allocation8 + $0x68] sm:$0xff] %v468
    %685 = vst [vmem:[#allocation8 + $0x70] sm:$0xff] %v473
    %686 = vst [vmem:[#allocation8 + $0x78] sm:$0xff] %v476
    %687 = vst [vmem:[#allocation8 + $0x80] sm:$0xff] %v481
    %688 = vst [vmem:[#allocation8 + $0x88] sm:$0xff] %v484
    %689 = vst [vmem:[#allocation8 + $0x90] sm:$0xff] %v489
    %690 = vst [vmem:[#allocation8 + $0x98] sm:$0xff] %v492
    %691 = vst [vmem:[#allocation8 + $0xa0] sm:$0xff] %v497
    %692 = vst [vmem:[#allocation8 + $0xa8] sm:$0xff] %v500
    %693 = vst [vmem:[#allocation8 + $0xb0] sm:$0xff] %v505
    %694 = vst [vmem:[#allocation8 + $0xb8] sm:$0xff] %v508
    %695 = vst [vmem:[#allocation8 + $0xc0] sm:$0xff] %v513
    %696 = vst [vmem:[#allocation8 + $0xc8] sm:$0xff] %v516
    %697 = vst [vmem:[#allocation8 + $0xd0] sm:$0xff] %v521
    %698 = vst [vmem:[#allocation8 + $0xd8] sm:$0xff] %v524
    %699 = vst [vmem:[#allocation8 + $0xe0] sm:$0xff] %v529
    %700 = vst [vmem:[#allocation8 + $0xe8] sm:$0xff] %v532
    %701 = vst [vmem:[#allocation8 + $0xf0] sm:$0xff] %v537
    %702 = vst [vmem:[#allocation8 + $0xf8] sm:$0xff] %v540
    %703 = vst [vmem:[#allocation8 + $0x100] sm:$0xff] %v545
    %704 = vst [vmem:[#allocation8 + $0x108] sm:$0xff] %v548
    %705 = vst [vmem:[#allocation8 + $0x110] sm:$0xff] %v553
    %706 = vst [vmem:[#allocation8 + $0x118] sm:$0xff] %v556
    %707 = vst [vmem:[#allocation8 + $0x120] sm:$0xff] %v561
    %708 = vst [vmem:[#allocation8 + $0x128] sm:$0xff] %v564
    %709 = vst [vmem:[#allocation8 + $0x130] sm:$0xff] %v569
    %710 = vst [vmem:[#allocation8 + $0x138] sm:$0xff] %v572
    %711 = vst [vmem:[#allocation8 + $0x140] sm:$0xff] %v577
    %712 = vst [vmem:[#allocation8 + $0x148] sm:$0xff] %v580
    %713 = vst [vmem:[#allocation8 + $0x150] sm:$0xff] %v585
    %714 = vst [vmem:[#allocation8 + $0x158] sm:$0xff] %v588
    %715 = vst [vmem:[#allocation8 + $0x160] sm:$0xff] %v593
    %716 = vst [vmem:[#allocation8 + $0x168] sm:$0xff] %v596
    %717 = vst [vmem:[#allocation8 + $0x170] sm:$0xff] %v601
    %718 = vst [vmem:[#allocation8 + $0x178] sm:$0xff] %v604
    %719 = vst [vmem:[#allocation8 + $0x180] sm:$0xff] %v609
    %720 = vst [vmem:[#allocation8 + $0x188] sm:$0xff] %v612
    %721 = vst [vmem:[#allocation8 + $0x190] sm:$0xff] %v617
    %722 = vst [vmem:[#allocation8 + $0x198] sm:$0xff] %v620
    %723 = vst [vmem:[#allocation8 + $0x1a0] sm:$0xff] %v625
    %724 = vst [vmem:[#allocation8 + $0x1a8] sm:$0xff] %v628
    %725 = vst [vmem:[#allocation8 + $0x1b0] sm:$0xff] %v633
    %726 = vst [vmem:[#allocation8 + $0x1b8] sm:$0xff] %v636
    %727 = vst [vmem:[#allocation8 + $0x1c0] sm:$0xff] %v641
    %728 = vst [vmem:[#allocation8 + $0x1c8] sm:$0xff] %v644
    %729 = vst [vmem:[#allocation8 + $0x1d0] sm:$0xff] %v649
    %730 = vst [vmem:[#allocation8 + $0x1d8] sm:$0xff] %v652
    %731 = vst [vmem:[#allocation8 + $0x1e0] sm:$0xff] %v657
    %732 = vst [vmem:[#allocation8 + $0x1e8] sm:$0xff] %v660
    %733 = vst [vmem:[#allocation8 + $0x1f0] sm:$0xff] %v665
    %734 = vst [vmem:[#allocation8 + $0x1f8] sm:$0xff] %v668
    // Predicated region
    $region26: #{_deform_conv_forward.2} parent=1 // pred_check
      _
    $region27: #{_deform_conv_forward.2} parent=1 // pred_check_branch
      %736 = sbr.rel (0) target = $region29
    $region28: #{_deform_conv_forward.2} parent=1 // pred_region
      %s738 = ssub.s32 8192, 8192
      %739 = vsyncadd [#allocation4], %s738
      %s740 = sshll.u32 [#allocation8], 4
      %s741 = int_to_ptr.vmem [resolvable:$true] %s740
      %746 = dma.vmem_to_hbm [thread:$0]  %s741, 8192, %s3, [#allocation4], 128, 128, 8
    $region29: #{_deform_conv_forward.2} parent=1 // pred_fallthru
      _
    // Predicated region
    $region30: #{_deform_conv_forward.2} parent=1 // pred_check
      _
    $region31: #{_deform_conv_forward.2} parent=1 // pred_check_branch
      %748 = sbr.rel (0) target = $region33
    $region32: #{_deform_conv_forward.2} parent=1 // pred_region
      %749 = dma.done [#allocation4], 8192
    $region33: #{_deform_conv_forward.2} parent=1 // pred_fallthru
      _
    %750 = vsyncpa [#allocation3], 1
    %751 = vsyncpa [#allocation6], 1
    %752 = vsyncpa [#allocation4], 1

// kernel: _deform_conv_forward.3
$region0: #{_deform_conv_forward.3}
  #allocation0 [shape = 'u32[]', space=smem, size = 0x4, offset = 0x4, fixed_abs, tag = 'smem constant byte address 0x4 - core index']
  #allocation1 [shape = 'u32[144,128]{1,0:T(1,128)}', space=vmem, size = 0x12000, scoped, tag = 'internal scratch']
  %s0 = inlined_call_operand.hbm [shape: bf16[512,128], index: 0, kind: input, shape index: {}]
  %s1 = inlined_call_operand.hbm [shape: bf16[128,128], index: 1, kind: input, shape index: {}]
  %s2 = inlined_call_operand.hbm [shape: f32[1,128], index: 2, kind: input, shape index: {}]
  %s3 = inlined_call_operand.hbm [shape: f32[1,128], index: 3, kind: input, shape index: {}]
  %s4 = inlined_call_operand.hbm [shape: f32[512,128], index: 4, kind: output, shape index: {}]
  %s5 = sld [smem:[#allocation0]]
  $region42: #{_deform_conv_forward.3} parent=0
    _
  %s7 = ssub.s32 1, %s5
  %s8 = scalar_select 0, %s7, %s5
  $region1: #{_deform_conv_forward.3} parent=0
    #allocation2 [shape = 'u8[131072]{0}', space=vmem, size = 0x20000, scoped, tag = 'input window, operand 0, single buffered']
    #allocation3 [shape = 's32[1]{0}', space=sflag, size = 0x4, scoped, tag = 'scoped memory for _deform_conv_forward.3']
    #allocation4 [shape = 's32[1]{0}', space=sflag, size = 0x4, scoped, tag = 'scoped memory for _deform_conv_forward.3']
    #allocation5 [shape = 'u8[32768]{0}', space=vmem, size = 0x8000, scoped, tag = 'input window, operand 1, single buffered']
    #allocation6 [shape = 's32[1]{0}', space=sflag, size = 0x4, scoped, tag = 'scoped memory for _deform_conv_forward.3']
    #allocation7 [shape = 'u8[512]{0}', space=vmem, size = 0x400, scoped, tag = 'input window, operand 2, single buffered']
    #allocation8 [shape = 'u8[512]{0}', space=vmem, size = 0x400, scoped, tag = 'input window, operand 3, single buffered']
    #allocation9 [shape = 's32[1]{0}', space=sflag, size = 0x4, scoped, tag = 'scoped memory for _deform_conv_forward.3']
    #allocation10 [shape = 'u8[262144]{0}', space=vmem, size = 0x40000, scoped, tag = 'output window, operand 0, single buffered']
    %9 = vsyncpa [#allocation3], 0
    %10 = vsyncpa [#allocation6], 0
    %11 = vsyncpa [#allocation9], 0
    %12 = vsyncpa [#allocation4], 0
    // Predicated region
    $region2: #{_deform_conv_forward.3} parent=1 // pred_check
      _
    $region3: #{_deform_conv_forward.3} parent=1 // pred_check_branch
      %14 = sbr.rel (0) target = $region5
    $region4: #{_deform_conv_forward.3} parent=1 // pred_region
      %s16 = ssub.s32 4096, 4096
      %17 = vsyncadd [#allocation3], %s16
      %s18 = sshll.u32 [#allocation2], 4
      %s19 = int_to_ptr.vmem [resolvable:$true] %s18
      %24 = dma.hbm_to_vmem [thread:$0]  %s0, 4096, %s19, [#allocation3], 64, 64, 4
    $region5: #{_deform_conv_forward.3} parent=1 // pred_fallthru
      _
    // Predicated region
    $region6: #{_deform_conv_forward.3} parent=1 // pred_check
      _
    $region7: #{_deform_conv_forward.3} parent=1 // pred_check_branch
      %26 = sbr.rel (0) target = $region9
    $region8: #{_deform_conv_forward.3} parent=1 // pred_region
      %s28 = ssub.s32 1024, 1024
      %29 = vsyncadd [#allocation6], %s28
      %s30 = sshll.u32 [#allocation5], 4
      %s31 = int_to_ptr.vmem [resolvable:$true] %s30
      %36 = dma.hbm_to_vmem [thread:$0]  %s1, 1024, %s31, [#allocation6], 64, 64, 4
    $region9: #{_deform_conv_forward.3} parent=1 // pred_fallthru
      _
    // Predicated region
    $region10: #{_deform_conv_forward.3} parent=1 // pred_check
      _
    $region11: #{_deform_conv_forward.3} parent=1 // pred_check_branch
      %38 = sbr.rel (0) target = $region13
    $region12: #{_deform_conv_forward.3} parent=1 // pred_region
      %s40 = ssub.s32 16, 16
      %41 = vsyncadd [#allocation6], %s40
      %s43 = sshll.u32 [#allocation7], 4
      %s44 = int_to_ptr.vmem [resolvable:$true] %s43
      %46 = dma.hbm_to_vmem [thread:$0]  %s2, 16, %s44, [#allocation6]
    $region13: #{_deform_conv_forward.3} parent=1 // pred_fallthru
      _
    // Predicated region
    $region14: #{_deform_conv_forward.3} parent=1 // pred_check
      _
    $region15: #{_deform_conv_forward.3} parent=1 // pred_check_branch
      %48 = sbr.rel (0) target = $region17
    $region16: #{_deform_conv_forward.3} parent=1 // pred_region
      %s50 = ssub.s32 16, 16
      %51 = vsyncadd [#allocation9], %s50
      %s53 = sshll.u32 [#allocation8], 4
      %s54 = int_to_ptr.vmem [resolvable:$true] %s53
      %56 = dma.hbm_to_vmem [thread:$0]  %s3, 16, %s54, [#allocation9]
    $region17: #{_deform_conv_forward.3} parent=1 // pred_fallthru
      _
    // Predicated region
    $region18: #{_deform_conv_forward.3} parent=1 // pred_check
      _
    $region19: #{_deform_conv_forward.3} parent=1 // pred_check_branch
      %58 = sbr.rel (0) target = $region21
    $region20: #{_deform_conv_forward.3} parent=1 // pred_region
      %59 = dma.done [#allocation3], 4096
    $region21: #{_deform_conv_forward.3} parent=1 // pred_fallthru
      _
    // Predicated region
    $region22: #{_deform_conv_forward.3} parent=1 // pred_check
      _
    $region23: #{_deform_conv_forward.3} parent=1 // pred_check_branch
      %61 = sbr.rel (0) target = $region25
    $region24: #{_deform_conv_forward.3} parent=1 // pred_region
      %62 = dma.done [#allocation6], 1024
    $region25: #{_deform_conv_forward.3} parent=1 // pred_fallthru
      _
    // Predicated region
    $region26: #{_deform_conv_forward.3} parent=1 // pred_check
      _
    $region27: #{_deform_conv_forward.3} parent=1 // pred_check_branch
      %64 = sbr.rel (0) target = $region29
    $region28: #{_deform_conv_forward.3} parent=1 // pred_region
      %65 = dma.done [#allocation6], 16
    $region29: #{_deform_conv_forward.3} parent=1 // pred_fallthru
      _
    // Predicated region
    $region30: #{_deform_conv_forward.3} parent=1 // pred_check
      _
    $region31: #{_deform_conv_forward.3} parent=1 // pred_check_branch
      %67 = sbr.rel (0) target = $region33
    $region32: #{_deform_conv_forward.3} parent=1 // pred_region
      %68 = dma.done [#allocation9], 16
    $region33: #{_deform_conv_forward.3} parent=1 // pred_fallthru
      _
    %v70 = vld [vmem:[#allocation2] sm:$0xf]
    %v71 = vld [vmem:[#allocation2 + $0x4] sm:$0xf]
    %v72 = vld [vmem:[#allocation2 + $0x8] sm:$0xf]
    %v73 = vld [vmem:[#allocation2 + $0xc] sm:$0xf]
    %v74 = vld [vmem:[#allocation2 + $0x10] sm:$0xf]
    %v75 = vld [vmem:[#allocation2 + $0x14] sm:$0xf]
    %v76 = vld [vmem:[#allocation2 + $0x18] sm:$0xf]
    %v77 = vld [vmem:[#allocation2 + $0x1c] sm:$0xf]
    %v78 = vld [vmem:[#allocation2 + $0x20] sm:$0xf]
    %v79 = vld [vmem:[#allocation2 + $0x24] sm:$0xf]
    %v80 = vld [vmem:[#allocation2 + $0x28] sm:$0xf]
    %v81 = vld [vmem:[#allocation2 + $0x2c] sm:$0xf]
    %v82 = vld [vmem:[#allocation2 + $0x30] sm:$0xf]
    %v83 = vld [vmem:[#allocation2 + $0x34] sm:$0xf]
    %v84 = vld [vmem:[#allocation2 + $0x38] sm:$0xf]
    %v85 = vld [vmem:[#allocation2 + $0x3c] sm:$0xf]
    %v86 = vld [vmem:[#allocation2 + $0x40] sm:$0xf]
    %v87 = vld [vmem:[#allocation2 + $0x44] sm:$0xf]
    %v88 = vld [vmem:[#allocation2 + $0x48] sm:$0xf]
    %v89 = vld [vmem:[#allocation2 + $0x4c] sm:$0xf]
    %v90 = vld [vmem:[#allocation2 + $0x50] sm:$0xf]
    %v91 = vld [vmem:[#allocation2 + $0x54] sm:$0xf]
    %v92 = vld [vmem:[#allocation2 + $0x58] sm:$0xf]
    %v93 = vld [vmem:[#allocation2 + $0x5c] sm:$0xf]
    %v94 = vld [vmem:[#allocation2 + $0x60] sm:$0xf]
    %v95 = vld [vmem:[#allocation2 + $0x64] sm:$0xf]
    %v96 = vld [vmem:[#allocation2 + $0x68] sm:$0xf]
    %v97 = vld [vmem:[#allocation2 + $0x6c] sm:$0xf]
    %v98 = vld [vmem:[#allocation2 + $0x70] sm:$0xf]
    %v99 = vld [vmem:[#allocation2 + $0x74] sm:$0xf]
    %v100 = vld [vmem:[#allocation2 + $0x78] sm:$0xf]
    %v101 = vld [vmem:[#allocation2 + $0x7c] sm:$0xf]
    %v102 = vld [vmem:[#allocation2 + $0x80] sm:$0xf]
    %v103 = vld [vmem:[#allocation2 + $0x84] sm:$0xf]
    %v104 = vld [vmem:[#allocation2 + $0x88] sm:$0xf]
    %v105 = vld [vmem:[#allocation2 + $0x8c] sm:$0xf]
    %v106 = vld [vmem:[#allocation2 + $0x90] sm:$0xf]
    %v107 = vld [vmem:[#allocation2 + $0x94] sm:$0xf]
    %v108 = vld [vmem:[#allocation2 + $0x98] sm:$0xf]
    %v109 = vld [vmem:[#allocation2 + $0x9c] sm:$0xf]
    %v110 = vld [vmem:[#allocation2 + $0xa0] sm:$0xf]
    %v111 = vld [vmem:[#allocation2 + $0xa4] sm:$0xf]
    %v112 = vld [vmem:[#allocation2 + $0xa8] sm:$0xf]
    %v113 = vld [vmem:[#allocation2 + $0xac] sm:$0xf]
    %v114 = vld [vmem:[#allocation2 + $0xb0] sm:$0xf]
    %v115 = vld [vmem:[#allocation2 + $0xb4] sm:$0xf]
    %v116 = vld [vmem:[#allocation2 + $0xb8] sm:$0xf]
    %v117 = vld [vmem:[#allocation2 + $0xbc] sm:$0xf]
    %v118 = vld [vmem:[#allocation2 + $0xc0] sm:$0xf]
    %v119 = vld [vmem:[#allocation2 + $0xc4] sm:$0xf]
    %v120 = vld [vmem:[#allocation2 + $0xc8] sm:$0xf]
    %v121 = vld [vmem:[#allocation2 + $0xcc] sm:$0xf]
    %v122 = vld [vmem:[#allocation2 + $0xd0] sm:$0xf]
    %v123 = vld [vmem:[#allocation2 + $0xd4] sm:$0xf]
    %v124 = vld [vmem:[#allocation2 + $0xd8] sm:$0xf]
    %v125 = vld [vmem:[#allocation2 + $0xdc] sm:$0xf]
    %v126 = vld [vmem:[#allocation2 + $0xe0] sm:$0xf]
    %v127 = vld [vmem:[#allocation2 + $0xe4] sm:$0xf]
    %v128 = vld [vmem:[#allocation2 + $0xe8] sm:$0xf]
    %v129 = vld [vmem:[#allocation2 + $0xec] sm:$0xf]
    %v130 = vld [vmem:[#allocation2 + $0xf0] sm:$0xf]
    %v131 = vld [vmem:[#allocation2 + $0xf4] sm:$0xf]
    %v132 = vld [vmem:[#allocation2 + $0xf8] sm:$0xf]
    %v133 = vld [vmem:[#allocation2 + $0xfc] sm:$0xf]
    %v134 = vld [vmem:[#allocation5] sm:$0xf]
    %v135 = vld [vmem:[#allocation5 + $0x4] sm:$0xf]
    %v136 = vld [vmem:[#allocation5 + $0x8] sm:$0xf]
    %v137 = vld [vmem:[#allocation5 + $0xc] sm:$0xf]
    %v138 = vld [vmem:[#allocation5 + $0x10] sm:$0xf]
    %v139 = vld [vmem:[#allocation5 + $0x14] sm:$0xf]
    %v140 = vld [vmem:[#allocation5 + $0x18] sm:$0xf]
    %v141 = vld [vmem:[#allocation5 + $0x1c] sm:$0xf]
    %v142 = vld [vmem:[#allocation5 + $0x20] sm:$0xf]
    %v143 = vld [vmem:[#allocation5 + $0x24] sm:$0xf]
    %v144 = vld [vmem:[#allocation5 + $0x28] sm:$0xf]
    %v145 = vld [vmem:[#allocation5 + $0x2c] sm:$0xf]
    %v146 = vld [vmem:[#allocation5 + $0x30] sm:$0xf]
    %v147 = vld [vmem:[#allocation5 + $0x34] sm:$0xf]
    %v148 = vld [vmem:[#allocation5 + $0x38] sm:$0xf]
    %v149 = vld [vmem:[#allocation5 + $0x3c] sm:$0xf]
    %v214 = vunpack.c.l.b16 %v70
    %v215 = vunpack.c.l.b16 %v71
    %v216 = vunpack.c.l.b16 %v72
    %v217 = vunpack.c.l.b16 %v73
    %v218 = vunpack.c.l.b16 %v74
    %v219 = vunpack.c.l.b16 %v75
    %v220 = vunpack.c.l.b16 %v76
    %v221 = vunpack.c.l.b16 %v77
    %v222 = vunpack.c.l.b16 %v78
    %v223 = vunpack.c.l.b16 %v79
    %v224 = vunpack.c.l.b16 %v80
    %v225 = vunpack.c.l.b16 %v81
    %v226 = vunpack.c.l.b16 %v82
    %v227 = vunpack.c.l.b16 %v83
    %v228 = vunpack.c.l.b16 %v84
    %v229 = vunpack.c.l.b16 %v85
    %v230 = vunpack.c.l.b16 %v86
    %v231 = vunpack.c.l.b16 %v87
    %v232 = vunpack.c.l.b16 %v88
    %v233 = vunpack.c.l.b16 %v89
    %v234 = vunpack.c.l.b16 %v90
    %v235 = vunpack.c.l.b16 %v91
    %v236 = vunpack.c.l.b16 %v92
    %v237 = vunpack.c.l.b16 %v93
    %v238 = vunpack.c.l.b16 %v94
    %v239 = vunpack.c.l.b16 %v95
    %v240 = vunpack.c.l.b16 %v96
    %v241 = vunpack.c.l.b16 %v97
    %v242 = vunpack.c.l.b16 %v98
    %v243 = vunpack.c.l.b16 %v99
    %v244 = vunpack.c.l.b16 %v100
    %v245 = vunpack.c.l.b16 %v101
    %v246 = vunpack.c.l.b16 %v102
    %v247 = vunpack.c.l.b16 %v103
    %v248 = vunpack.c.l.b16 %v104
    %v249 = vunpack.c.l.b16 %v105
    %v250 = vunpack.c.l.b16 %v106
    %v251 = vunpack.c.l.b16 %v107
    %v252 = vunpack.c.l.b16 %v108
    %v253 = vunpack.c.l.b16 %v109
    %v254 = vunpack.c.l.b16 %v110
    %v255 = vunpack.c.l.b16 %v111
    %v256 = vunpack.c.l.b16 %v112
    %v257 = vunpack.c.l.b16 %v113
    %v258 = vunpack.c.l.b16 %v114
    %v259 = vunpack.c.l.b16 %v115
    %v260 = vunpack.c.l.b16 %v116
    %v261 = vunpack.c.l.b16 %v117
    %v262 = vunpack.c.l.b16 %v118
    %v263 = vunpack.c.l.b16 %v119
    %v264 = vunpack.c.l.b16 %v120
    %v265 = vunpack.c.l.b16 %v121
    %v266 = vunpack.c.l.b16 %v122
    %v267 = vunpack.c.l.b16 %v123
    %v268 = vunpack.c.l.b16 %v124
    %v269 = vunpack.c.l.b16 %v125
    %v270 = vunpack.c.l.b16 %v126
    %v271 = vunpack.c.l.b16 %v127
    %v272 = vunpack.c.l.b16 %v128
    %v273 = vunpack.c.l.b16 %v129
    %v274 = vunpack.c.l.b16 %v130
    %v275 = vunpack.c.l.b16 %v131
    %v276 = vunpack.c.l.b16 %v132
    %v277 = vunpack.c.l.b16 %v133
    %v278 = vpack.c.b16 %v215, %v214
    %v279 = vpack.c.b16 %v217, %v216
    %v280 = vpack.c.b16 %v219, %v218
    %v281 = vpack.c.b16 %v221, %v220
    %v282 = vpack.c.b16 %v223, %v222
    %v283 = vpack.c.b16 %v225, %v224
    %v284 = vpack.c.b16 %v227, %v226
    %v285 = vpack.c.b16 %v229, %v228
    %v286 = vpack.c.b16 %v231, %v230
    %v287 = vpack.c.b16 %v233, %v232
    %v288 = vpack.c.b16 %v235, %v234
    %v289 = vpack.c.b16 %v237, %v236
    %v290 = vpack.c.b16 %v239, %v238
    %v291 = vpack.c.b16 %v241, %v240
    %v292 = vpack.c.b16 %v243, %v242
    %v293 = vpack.c.b16 %v245, %v244
    %v294 = vpack.c.b16 %v247, %v246
    %v295 = vpack.c.b16 %v249, %v248
    %v296 = vpack.c.b16 %v251, %v250
    %v297 = vpack.c.b16 %v253, %v252
    %v298 = vpack.c.b16 %v255, %v254
    %v299 = vpack.c.b16 %v257, %v256
    %v300 = vpack.c.b16 %v259, %v258
    %v301 = vpack.c.b16 %v261, %v260
    %v302 = vpack.c.b16 %v263, %v262
    %v303 = vpack.c.b16 %v265, %v264
    %v304 = vpack.c.b16 %v267, %v266
    %v305 = vpack.c.b16 %v269, %v268
    %v306 = vpack.c.b16 %v271, %v270
    %v307 = vpack.c.b16 %v273, %v272
    %v308 = vpack.c.b16 %v275, %v274
    %v309 = vpack.c.b16 %v277, %v276
    %v358 = vunpack.c.l.b16 %v134
    %v359 = vunpack.c.l.b16 %v135
    %v360 = vunpack.c.l.b16 %v136
    %v361 = vunpack.c.l.b16 %v137
    %v362 = vunpack.c.l.b16 %v138
    %v363 = vunpack.c.l.b16 %v139
    %v364 = vunpack.c.l.b16 %v140
    %v365 = vunpack.c.l.b16 %v141
    %v366 = vunpack.c.l.b16 %v142
    %v367 = vunpack.c.l.b16 %v143
    %v368 = vunpack.c.l.b16 %v144
    %v369 = vunpack.c.l.b16 %v145
    %v370 = vunpack.c.l.b16 %v146
    %v371 = vunpack.c.l.b16 %v147
    %v372 = vunpack.c.l.b16 %v148
    %v373 = vunpack.c.l.b16 %v149
    %v374 = vpack.c.b16 %v359, %v358
    %v375 = vpack.c.b16 %v361, %v360
    %v376 = vpack.c.b16 %v363, %v362
    %v377 = vpack.c.b16 %v365, %v364
    %v378 = vpack.c.b16 %v367, %v366
    %v379 = vpack.c.b16 %v369, %v368
    %v380 = vpack.c.b16 %v371, %v370
    %v381 = vpack.c.b16 %v373, %v372
    %390 = vmatprep.subr.bf16.mxu0 0
    %391 = vmatpush1.bf16.msra.mxu0 %v374
    %392 = vmatprep.subr.bf16.mxu0 0
    %393 = vmatpush1.bf16.msra.mxu0 %v375
    %394 = vmatprep.subr.bf16.mxu0 0
    %395 = vmatpush1.bf16.msra.mxu0 %v376
    %396 = vmatprep.subr.bf16.mxu0 0
    %397 = vmatpush1.bf16.msra.mxu0 %v377
    %398 = vmatprep.subr.bf16.mxu0 0
    %399 = vmatpush1.bf16.msra.mxu0 %v378
    %400 = vmatprep.subr.bf16.mxu0 0
    %401 = vmatpush1.bf16.msra.mxu0 %v379
    %402 = vmatprep.subr.bf16.mxu0 0
    %403 = vmatpush1.bf16.msra.mxu0 %v380
    %404 = vmatprep.subr.bf16.mxu0 0
    %405 = vmatpush1.bf16.msra.mxu0 %v381
    %406 = vmatprep.subr.bf16.mxu0 0
    %407 = vmatpush1.bf16.msra.mxu0 0
    %408 = vmatprep.subr.bf16.mxu0 0
    %409 = vmatpush1.bf16.msra.mxu0 0
    %410 = vmatprep.subr.bf16.mxu0 0
    %411 = vmatpush1.bf16.msra.mxu0 0
    %412 = vmatprep.subr.bf16.mxu0 0
    %413 = vmatpush1.bf16.msra.mxu0 0
    %414 = vmatprep.subr.bf16.mxu0 0
    %415 = vmatpush1.bf16.msra.mxu0 0
    %416 = vmatprep.subr.bf16.mxu0 0
    %417 = vmatpush1.bf16.msra.mxu0 0
    %418 = vmatprep.subr.bf16.mxu0 0
    %419 = vmatpush1.bf16.msra.mxu0 0
    %420 = vmatprep.subr.bf16.mxu0 0
    %421 = vmatpush1.bf16.msra.mxu0 0
    %422 = vmatprep.mubr.bf16.mxu0 0
    %423 = vmatmul.mubr.bf16.gmra.mrb[0].mxu0 %v278
    %v424 = vpop.f32.mrb[0].mxu0
    %v425 = vadd.f32 0.0, %v424
    %v426 = vpop.f32.mrb[0].mxu0
    %v427 = vpop.f32.mrb[0].mxu0
    %v428 = vadd.f32 0.0, %v427
    %v429 = vpop.f32.mrb[0].mxu0
    %430 = vmatprep.mubr.bf16.mxu0 0
    %431 = vmatmul.mubr.bf16.gmra.mrb[0].mxu0 %v279
    %v432 = vpop.f32.mrb[0].mxu0
    %v433 = vadd.f32 0.0, %v432
    %v434 = vpop.f32.mrb[0].mxu0
    %v435 = vpop.f32.mrb[0].mxu0
    %v436 = vadd.f32 0.0, %v435
    %v437 = vpop.f32.mrb[0].mxu0
    %438 = vmatprep.mubr.bf16.mxu0 0
    %439 = vmatmul.mubr.bf16.gmra.mrb[0].mxu0 %v280
    %v440 = vpop.f32.mrb[0].mxu0
    %v441 = vadd.f32 0.0, %v440
    %v442 = vpop.f32.mrb[0].mxu0
    %v443 = vpop.f32.mrb[0].mxu0
    %v444 = vadd.f32 0.0, %v443
    %v445 = vpop.f32.mrb[0].mxu0
    %446 = vmatprep.mubr.bf16.mxu0 0
    %447 = vmatmul.mubr.bf16.gmra.mrb[0].mxu0 %v281
    %v448 = vpop.f32.mrb[0].mxu0
    %v449 = vadd.f32 0.0, %v448
    %v450 = vpop.f32.mrb[0].mxu0
    %v451 = vpop.f32.mrb[0].mxu0
    %v452 = vadd.f32 0.0, %v451
    %v453 = vpop.f32.mrb[0].mxu0
    %454 = vmatprep.mubr.bf16.mxu0 0
    %455 = vmatmul.mubr.bf16.gmra.mrb[0].mxu0 %v282
    %v456 = vpop.f32.mrb[0].mxu0
    %v457 = vadd.f32 0.0, %v456
    %v458 = vpop.f32.mrb[0].mxu0
    %v459 = vpop.f32.mrb[0].mxu0
    %v460 = vadd.f32 0.0, %v459
    %v461 = vpop.f32.mrb[0].mxu0
    %462 = vmatprep.mubr.bf16.mxu0 0
    %463 = vmatmul.mubr.bf16.gmra.mrb[0].mxu0 %v283
    %v464 = vpop.f32.mrb[0].mxu0
    %v465 = vadd.f32 0.0, %v464
    %v466 = vpop.f32.mrb[0].mxu0
    %v467 = vpop.f32.mrb[0].mxu0
    %v468 = vadd.f32 0.0, %v467
    %v469 = vpop.f32.mrb[0].mxu0
    %470 = vmatprep.mubr.bf16.mxu0 0
    %471 = vmatmul.mubr.bf16.gmra.mrb[0].mxu0 %v284
    %v472 = vpop.f32.mrb[0].mxu0
    %v473 = vadd.f32 0.0, %v472
    %v474 = vpop.f32.mrb[0].mxu0
    %v475 = vpop.f32.mrb[0].mxu0
    %v476 = vadd.f32 0.0, %v475
    %v477 = vpop.f32.mrb[0].mxu0
    %478 = vmatprep.mubr.bf16.mxu0 0
    %479 = vmatmul.mubr.bf16.gmra.mrb[0].mxu0 %v285
    %v480 = vpop.f32.mrb[0].mxu0
    %v481 = vadd.f32 0.0, %v480
    %v482 = vpop.f32.mrb[0].mxu0
    %v483 = vpop.f32.mrb[0].mxu0
    %v484 = vadd.f32 0.0, %v483
    %v485 = vpop.f32.mrb[0].mxu0
    %486 = vmatprep.mubr.bf16.mxu0 0
    %487 = vmatmul.mubr.bf16.gmra.mrb[0].mxu0 %v286
    %v488 = vpop.f32.mrb[0].mxu0
    %v489 = vadd.f32 0.0, %v488
    %v490 = vpop.f32.mrb[0].mxu0
    %v491 = vpop.f32.mrb[0].mxu0
    %v492 = vadd.f32 0.0, %v491
    %v493 = vpop.f32.mrb[0].mxu0
    %494 = vmatprep.mubr.bf16.mxu0 0
    %495 = vmatmul.mubr.bf16.gmra.mrb[0].mxu0 %v287
    %v496 = vpop.f32.mrb[0].mxu0
    %v497 = vadd.f32 0.0, %v496
    %v498 = vpop.f32.mrb[0].mxu0
    %v499 = vpop.f32.mrb[0].mxu0
    %v500 = vadd.f32 0.0, %v499
    %v501 = vpop.f32.mrb[0].mxu0
    %502 = vmatprep.mubr.bf16.mxu0 0
    %503 = vmatmul.mubr.bf16.gmra.mrb[0].mxu0 %v288
    %v504 = vpop.f32.mrb[0].mxu0
    %v505 = vadd.f32 0.0, %v504
    %v506 = vpop.f32.mrb[0].mxu0
    %v507 = vpop.f32.mrb[0].mxu0
    %v508 = vadd.f32 0.0, %v507
    %v509 = vpop.f32.mrb[0].mxu0
    %510 = vmatprep.mubr.bf16.mxu0 0
    %511 = vmatmul.mubr.bf16.gmra.mrb[0].mxu0 %v289
    %v512 = vpop.f32.mrb[0].mxu0
    %v513 = vadd.f32 0.0, %v512
    %v514 = vpop.f32.mrb[0].mxu0
    %v515 = vpop.f32.mrb[0].mxu0
    %v516 = vadd.f32 0.0, %v515
    %v517 = vpop.f32.mrb[0].mxu0
    %518 = vmatprep.mubr.bf16.mxu0 0
    %519 = vmatmul.mubr.bf16.gmra.mrb[0].mxu0 %v290
    %v520 = vpop.f32.mrb[0].mxu0
    %v521 = vadd.f32 0.0, %v520
    %v522 = vpop.f32.mrb[0].mxu0
    %v523 = vpop.f32.mrb[0].mxu0
    %v524 = vadd.f32 0.0, %v523
    %v525 = vpop.f32.mrb[0].mxu0
    %526 = vmatprep.mubr.bf16.mxu0 0
    %527 = vmatmul.mubr.bf16.gmra.mrb[0].mxu0 %v291
    %v528 = vpop.f32.mrb[0].mxu0
    %v529 = vadd.f32 0.0, %v528
    %v530 = vpop.f32.mrb[0].mxu0
    %v531 = vpop.f32.mrb[0].mxu0
    %v532 = vadd.f32 0.0, %v531
    %v533 = vpop.f32.mrb[0].mxu0
    %534 = vmatprep.mubr.bf16.mxu0 0
    %535 = vmatmul.mubr.bf16.gmra.mrb[0].mxu0 %v292
    %v536 = vpop.f32.mrb[0].mxu0
    %v537 = vadd.f32 0.0, %v536
    %v538 = vpop.f32.mrb[0].mxu0
    %v539 = vpop.f32.mrb[0].mxu0
    %v540 = vadd.f32 0.0, %v539
    %v541 = vpop.f32.mrb[0].mxu0
    %542 = vmatprep.mubr.bf16.mxu0 0
    %543 = vmatmul.mubr.bf16.gmra.mrb[0].mxu0 %v293
    %v544 = vpop.f32.mrb[0].mxu0
    %v545 = vadd.f32 0.0, %v544
    %v546 = vpop.f32.mrb[0].mxu0
    %v547 = vpop.f32.mrb[0].mxu0
    %v548 = vadd.f32 0.0, %v547
    %v549 = vpop.f32.mrb[0].mxu0
    %550 = vmatprep.mubr.bf16.mxu0 0
    %551 = vmatmul.mubr.bf16.gmra.mrb[0].mxu0 %v294
    %v552 = vpop.f32.mrb[0].mxu0
    %v553 = vadd.f32 0.0, %v552
    %v554 = vpop.f32.mrb[0].mxu0
    %v555 = vpop.f32.mrb[0].mxu0
    %v556 = vadd.f32 0.0, %v555
    %v557 = vpop.f32.mrb[0].mxu0
    %558 = vmatprep.mubr.bf16.mxu0 0
    %559 = vmatmul.mubr.bf16.gmra.mrb[0].mxu0 %v295
    %v560 = vpop.f32.mrb[0].mxu0
    %v561 = vadd.f32 0.0, %v560
    %v562 = vpop.f32.mrb[0].mxu0
    %v563 = vpop.f32.mrb[0].mxu0
    %v564 = vadd.f32 0.0, %v563
    %v565 = vpop.f32.mrb[0].mxu0
    %566 = vmatprep.mubr.bf16.mxu0 0
    %567 = vmatmul.mubr.bf16.gmra.mrb[0].mxu0 %v296
    %v568 = vpop.f32.mrb[0].mxu0
    %v569 = vadd.f32 0.0, %v568
    %v570 = vpop.f32.mrb[0].mxu0
    %v571 = vpop.f32.mrb[0].mxu0
    %v572 = vadd.f32 0.0, %v571
    %v573 = vpop.f32.mrb[0].mxu0
    %574 = vmatprep.mubr.bf16.mxu0 0
    %575 = vmatmul.mubr.bf16.gmra.mrb[0].mxu0 %v297
    %v576 = vpop.f32.mrb[0].mxu0
    %v577 = vadd.f32 0.0, %v576
    %v578 = vpop.f32.mrb[0].mxu0
    %v579 = vpop.f32.mrb[0].mxu0
    %v580 = vadd.f32 0.0, %v579
    %v581 = vpop.f32.mrb[0].mxu0
    %582 = vmatprep.mubr.bf16.mxu0 0
    %583 = vmatmul.mubr.bf16.gmra.mrb[0].mxu0 %v298
    %v584 = vpop.f32.mrb[0].mxu0
    %v585 = vadd.f32 0.0, %v584
    %v586 = vpop.f32.mrb[0].mxu0
    %v587 = vpop.f32.mrb[0].mxu0
    %v588 = vadd.f32 0.0, %v587
    %v589 = vpop.f32.mrb[0].mxu0
    %590 = vmatprep.mubr.bf16.mxu0 0
    %591 = vmatmul.mubr.bf16.gmra.mrb[0].mxu0 %v299
    %v592 = vpop.f32.mrb[0].mxu0
    %v593 = vadd.f32 0.0, %v592
    %v594 = vpop.f32.mrb[0].mxu0
    %v595 = vpop.f32.mrb[0].mxu0
    %v596 = vadd.f32 0.0, %v595
    %v597 = vpop.f32.mrb[0].mxu0
    %598 = vmatprep.mubr.bf16.mxu0 0
    %599 = vmatmul.mubr.bf16.gmra.mrb[0].mxu0 %v300
    %v600 = vpop.f32.mrb[0].mxu0
    %v601 = vadd.f32 0.0, %v600
    %v602 = vpop.f32.mrb[0].mxu0
    %v603 = vpop.f32.mrb[0].mxu0
    %v604 = vadd.f32 0.0, %v603
    %v605 = vpop.f32.mrb[0].mxu0
    %606 = vmatprep.mubr.bf16.mxu0 0
    %607 = vmatmul.mubr.bf16.gmra.mrb[0].mxu0 %v301
    %v608 = vpop.f32.mrb[0].mxu0
    %v609 = vadd.f32 0.0, %v608
    %v610 = vpop.f32.mrb[0].mxu0
    %v611 = vpop.f32.mrb[0].mxu0
    %v612 = vadd.f32 0.0, %v611
    %v613 = vpop.f32.mrb[0].mxu0
    %614 = vmatprep.mubr.bf16.mxu0 0
    %615 = vmatmul.mubr.bf16.gmra.mrb[0].mxu0 %v302
    %v616 = vpop.f32.mrb[0].mxu0
    %v617 = vadd.f32 0.0, %v616
    %v618 = vpop.f32.mrb[0].mxu0
    %v619 = vpop.f32.mrb[0].mxu0
    %v620 = vadd.f32 0.0, %v619
    %v621 = vpop.f32.mrb[0].mxu0
    %622 = vmatprep.mubr.bf16.mxu0 0
    %623 = vmatmul.mubr.bf16.gmra.mrb[0].mxu0 %v303
    %v624 = vpop.f32.mrb[0].mxu0
    %v625 = vadd.f32 0.0, %v624
    %v626 = vpop.f32.mrb[0].mxu0
    %v627 = vpop.f32.mrb[0].mxu0
    %v628 = vadd.f32 0.0, %v627
    %v629 = vpop.f32.mrb[0].mxu0
    %630 = vmatprep.mubr.bf16.mxu0 0
    %631 = vmatmul.mubr.bf16.gmra.mrb[0].mxu0 %v304
    %v632 = vpop.f32.mrb[0].mxu0
    %v633 = vadd.f32 0.0, %v632
    %v634 = vpop.f32.mrb[0].mxu0
    %v635 = vpop.f32.mrb[0].mxu0
    %v636 = vadd.f32 0.0, %v635
    %v637 = vpop.f32.mrb[0].mxu0
    %638 = vmatprep.mubr.bf16.mxu0 0
    %639 = vmatmul.mubr.bf16.gmra.mrb[0].mxu0 %v305
    %v640 = vpop.f32.mrb[0].mxu0
    %v641 = vadd.f32 0.0, %v640
    %v642 = vpop.f32.mrb[0].mxu0
    %v643 = vpop.f32.mrb[0].mxu0
    %v644 = vadd.f32 0.0, %v643
    %v645 = vpop.f32.mrb[0].mxu0
    %646 = vmatprep.mubr.bf16.mxu0 0
    %647 = vmatmul.mubr.bf16.gmra.mrb[0].mxu0 %v306
    %v648 = vpop.f32.mrb[0].mxu0
    %v649 = vadd.f32 0.0, %v648
    %v650 = vpop.f32.mrb[0].mxu0
    %v651 = vpop.f32.mrb[0].mxu0
    %v652 = vadd.f32 0.0, %v651
    %v653 = vpop.f32.mrb[0].mxu0
    %654 = vmatprep.mubr.bf16.mxu0 0
    %655 = vmatmul.mubr.bf16.gmra.mrb[0].mxu0 %v307
    %v656 = vpop.f32.mrb[0].mxu0
    %v657 = vadd.f32 0.0, %v656
    %v658 = vpop.f32.mrb[0].mxu0
    %v659 = vpop.f32.mrb[0].mxu0
    %v660 = vadd.f32 0.0, %v659
    %v661 = vpop.f32.mrb[0].mxu0
    %662 = vmatprep.mubr.bf16.mxu0 0
    %663 = vmatmul.mubr.bf16.gmra.mrb[0].mxu0 %v308
    %v664 = vpop.f32.mrb[0].mxu0
    %v665 = vadd.f32 0.0, %v664
    %v666 = vpop.f32.mrb[0].mxu0
    %v667 = vpop.f32.mrb[0].mxu0
    %v668 = vadd.f32 0.0, %v667
    %v669 = vpop.f32.mrb[0].mxu0
    %670 = vmatprep.mubr.bf16.mxu0 0
    %671 = vmatmul.mubr.bf16.gmra.mrb[0].mxu0 %v309
    %v672 = vpop.f32.mrb[0].mxu0
    %v673 = vadd.f32 0.0, %v672
    %v674 = vpop.f32.mrb[0].mxu0
    %v675 = vpop.f32.mrb[0].mxu0
    %v676 = vadd.f32 0.0, %v675
    %v677 = vpop.f32.mrb[0].mxu0
    %678 = vdwg.mxu0
    %v679 = vld [vmem:[#allocation7] sm:$0x1]
    %v681 = vlaneseq
    %v682 = vshrl.u32 %v681, 7
    %v683 = vsub.s32 0, %v682
    %v684 = vrot.slane %v679, %v683
    %v686 = vmul.f32 %v425, %v684
    %v687 = vmul.f32 %v428, %v684
    %v688 = vmul.f32 %v433, %v684
    %v689 = vmul.f32 %v436, %v684
    %v690 = vmul.f32 %v441, %v684
    %v691 = vmul.f32 %v444, %v684
    %v692 = vmul.f32 %v449, %v684
    %v693 = vmul.f32 %v452, %v684
    %v694 = vmul.f32 %v457, %v684
    %v695 = vmul.f32 %v460, %v684
    %v696 = vmul.f32 %v465, %v684
    %v697 = vmul.f32 %v468, %v684
    %v698 = vmul.f32 %v473, %v684
    %v699 = vmul.f32 %v476, %v684
    %v700 = vmul.f32 %v481, %v684
    %v701 = vmul.f32 %v484, %v684
    %v702 = vmul.f32 %v489, %v684
    %v703 = vmul.f32 %v492, %v684
    %v704 = vmul.f32 %v497, %v684
    %v705 = vmul.f32 %v500, %v684
    %v706 = vmul.f32 %v505, %v684
    %v707 = vmul.f32 %v508, %v684
    %v708 = vmul.f32 %v513, %v684
    %v709 = vmul.f32 %v516, %v684
    %v710 = vmul.f32 %v521, %v684
    %v711 = vmul.f32 %v524, %v684
    %v712 = vmul.f32 %v529, %v684
    %v713 = vmul.f32 %v532, %v684
    %v714 = vmul.f32 %v537, %v684
    %v715 = vmul.f32 %v540, %v684
    %v716 = vmul.f32 %v545, %v684
    %v717 = vmul.f32 %v548, %v684
    %v718 = vmul.f32 %v553, %v684
    %v719 = vmul.f32 %v556, %v684
    %v720 = vmul.f32 %v561, %v684
    %v721 = vmul.f32 %v564, %v684
    %v722 = vmul.f32 %v569, %v684
    %v723 = vmul.f32 %v572, %v684
    %v724 = vmul.f32 %v577, %v684
    %v725 = vmul.f32 %v580, %v684
    %v726 = vmul.f32 %v585, %v684
    %v727 = vmul.f32 %v588, %v684
    %v728 = vmul.f32 %v593, %v684
    %v729 = vmul.f32 %v596, %v684
    %v730 = vmul.f32 %v601, %v684
    %v731 = vmul.f32 %v604, %v684
    %v732 = vmul.f32 %v609, %v684
    %v733 = vmul.f32 %v612, %v684
    %v734 = vmul.f32 %v617, %v684
    %v735 = vmul.f32 %v620, %v684
    %v736 = vmul.f32 %v625, %v684
    %v737 = vmul.f32 %v628, %v684
    %v738 = vmul.f32 %v633, %v684
    %v739 = vmul.f32 %v636, %v684
    %v740 = vmul.f32 %v641, %v684
    %v741 = vmul.f32 %v644, %v684
    %v742 = vmul.f32 %v649, %v684
    %v743 = vmul.f32 %v652, %v684
    %v744 = vmul.f32 %v657, %v684
    %v745 = vmul.f32 %v660, %v684
    %v746 = vmul.f32 %v665, %v684
    %v747 = vmul.f32 %v668, %v684
    %v748 = vmul.f32 %v673, %v684
    %v749 = vmul.f32 %v676, %v684
    %v750 = vld [vmem:[#allocation8] sm:$0x1]
    %v752 = vlaneseq
    %v753 = vshrl.u32 %v752, 7
    %v754 = vsub.s32 0, %v753
    %v755 = vrot.slane %v750, %v754
    %v757 = vadd.f32 %v686, %v755
    %v758 = vadd.f32 %v687, %v755
    %v759 = vadd.f32 %v688, %v755
    %v760 = vadd.f32 %v689, %v755
    %v761 = vadd.f32 %v690, %v755
    %v762 = vadd.f32 %v691, %v755
    %v763 = vadd.f32 %v692, %v755
    %v764 = vadd.f32 %v693, %v755
    %v765 = vadd.f32 %v694, %v755
    %v766 = vadd.f32 %v695, %v755
    %v767 = vadd.f32 %v696, %v755
    %v768 = vadd.f32 %v697, %v755
    %v769 = vadd.f32 %v698, %v755
    %v770 = vadd.f32 %v699, %v755
    %v771 = vadd.f32 %v700, %v755
    %v772 = vadd.f32 %v701, %v755
    %v773 = vadd.f32 %v702, %v755
    %v774 = vadd.f32 %v703, %v755
    %v775 = vadd.f32 %v704, %v755
    %v776 = vadd.f32 %v705, %v755
    %v777 = vadd.f32 %v706, %v755
    %v778 = vadd.f32 %v707, %v755
    %v779 = vadd.f32 %v708, %v755
    %v780 = vadd.f32 %v709, %v755
    %v781 = vadd.f32 %v710, %v755
    %v782 = vadd.f32 %v711, %v755
    %v783 = vadd.f32 %v712, %v755
    %v784 = vadd.f32 %v713, %v755
    %v785 = vadd.f32 %v714, %v755
    %v786 = vadd.f32 %v715, %v755
    %v787 = vadd.f32 %v716, %v755
    %v788 = vadd.f32 %v717, %v755
    %v789 = vadd.f32 %v718, %v755
    %v790 = vadd.f32 %v719, %v755
    %v791 = vadd.f32 %v720, %v755
    %v792 = vadd.f32 %v721, %v755
    %v793 = vadd.f32 %v722, %v755
    %v794 = vadd.f32 %v723, %v755
    %v795 = vadd.f32 %v724, %v755
    %v796 = vadd.f32 %v725, %v755
    %v797 = vadd.f32 %v726, %v755
    %v798 = vadd.f32 %v727, %v755
    %v799 = vadd.f32 %v728, %v755
    %v800 = vadd.f32 %v729, %v755
    %v801 = vadd.f32 %v730, %v755
    %v802 = vadd.f32 %v731, %v755
    %v803 = vadd.f32 %v732, %v755
    %v804 = vadd.f32 %v733, %v755
    %v805 = vadd.f32 %v734, %v755
    %v806 = vadd.f32 %v735, %v755
    %v807 = vadd.f32 %v736, %v755
    %v808 = vadd.f32 %v737, %v755
    %v809 = vadd.f32 %v738, %v755
    %v810 = vadd.f32 %v739, %v755
    %v811 = vadd.f32 %v740, %v755
    %v812 = vadd.f32 %v741, %v755
    %v813 = vadd.f32 %v742, %v755
    %v814 = vadd.f32 %v743, %v755
    %v815 = vadd.f32 %v744, %v755
    %v816 = vadd.f32 %v745, %v755
    %v817 = vadd.f32 %v746, %v755
    %v818 = vadd.f32 %v747, %v755
    %v819 = vadd.f32 %v748, %v755
    %v820 = vadd.f32 %v749, %v755
    %v821 = vmax.f32 %v757, 0.0
    %v822 = vmax.f32 %v758, 0.0
    %v823 = vmax.f32 %v759, 0.0
    %v824 = vmax.f32 %v760, 0.0
    %v825 = vmax.f32 %v761, 0.0
    %v826 = vmax.f32 %v762, 0.0
    %v827 = vmax.f32 %v763, 0.0
    %v828 = vmax.f32 %v764, 0.0
    %v829 = vmax.f32 %v765, 0.0
    %v830 = vmax.f32 %v766, 0.0
    %v831 = vmax.f32 %v767, 0.0
    %v832 = vmax.f32 %v768, 0.0
    %v833 = vmax.f32 %v769, 0.0
    %v834 = vmax.f32 %v770, 0.0
    %v835 = vmax.f32 %v771, 0.0
    %v836 = vmax.f32 %v772, 0.0
    %v837 = vmax.f32 %v773, 0.0
    %v838 = vmax.f32 %v774, 0.0
    %v839 = vmax.f32 %v775, 0.0
    %v840 = vmax.f32 %v776, 0.0
    %v841 = vmax.f32 %v777, 0.0
    %v842 = vmax.f32 %v778, 0.0
    %v843 = vmax.f32 %v779, 0.0
    %v844 = vmax.f32 %v780, 0.0
    %v845 = vmax.f32 %v781, 0.0
    %v846 = vmax.f32 %v782, 0.0
    %v847 = vmax.f32 %v783, 0.0
    %v848 = vmax.f32 %v784, 0.0
    %v849 = vmax.f32 %v785, 0.0
    %v850 = vmax.f32 %v786, 0.0
    %v851 = vmax.f32 %v787, 0.0
    %v852 = vmax.f32 %v788, 0.0
    %v853 = vmax.f32 %v789, 0.0
    %v854 = vmax.f32 %v790, 0.0
    %v855 = vmax.f32 %v791, 0.0
    %v856 = vmax.f32 %v792, 0.0
    %v857 = vmax.f32 %v793, 0.0
    %v858 = vmax.f32 %v794, 0.0
    %v859 = vmax.f32 %v795, 0.0
    %v860 = vmax.f32 %v796, 0.0
    %v861 = vmax.f32 %v797, 0.0
    %v862 = vmax.f32 %v798, 0.0
    %v863 = vmax.f32 %v799, 0.0
    %v864 = vmax.f32 %v800, 0.0
    %v865 = vmax.f32 %v801, 0.0
    %v866 = vmax.f32 %v802, 0.0
    %v867 = vmax.f32 %v803, 0.0
    %v868 = vmax.f32 %v804, 0.0
    %v869 = vmax.f32 %v805, 0.0
    %v870 = vmax.f32 %v806, 0.0
    %v871 = vmax.f32 %v807, 0.0
    %v872 = vmax.f32 %v808, 0.0
    %v873 = vmax.f32 %v809, 0.0
    %v874 = vmax.f32 %v810, 0.0
    %v875 = vmax.f32 %v811, 0.0
    %v876 = vmax.f32 %v812, 0.0
    %v877 = vmax.f32 %v813, 0.0
    %v878 = vmax.f32 %v814, 0.0
    %v879 = vmax.f32 %v815, 0.0
    %v880 = vmax.f32 %v816, 0.0
    %v881 = vmax.f32 %v817, 0.0
    %v882 = vmax.f32 %v818, 0.0
    %v883 = vmax.f32 %v819, 0.0
    %v884 = vmax.f32 %v820, 0.0
    %885 = vst [vmem:[#allocation10] sm:$0xff] %v821
    %886 = vst [vmem:[#allocation10 + $0x8] sm:$0xff] %v822
    %887 = vst [vmem:[#allocation10 + $0x10] sm:$0xff] %v823
    %888 = vst [vmem:[#allocation10 + $0x18] sm:$0xff] %v824
    %889 = vst [vmem:[#allocation10 + $0x20] sm:$0xff] %v825
    %890 = vst [vmem:[#allocation10 + $0x28] sm:$0xff] %v826
    %891 = vst [vmem:[#allocation10 + $0x30] sm:$0xff] %v827
    %892 = vst [vmem:[#allocation10 + $0x38] sm:$0xff] %v828
    %893 = vst [vmem:[#allocation10 + $0x40] sm:$0xff] %v829
    %894 = vst [vmem:[#allocation10 + $0x48] sm:$0xff] %v830
    %895 = vst [vmem:[#allocation10 + $0x50] sm:$0xff] %v831
    %896 = vst [vmem:[#allocation10 + $0x58] sm:$0xff] %v832
    %897 = vst [vmem:[#allocation10 + $0x60] sm:$0xff] %v833
    %898 = vst [vmem:[#allocation10 + $0x68] sm:$0xff] %v834
    %899 = vst [vmem:[#allocation10 + $0x70] sm:$0xff] %v835
    %900 = vst [vmem:[#allocation10 + $0x78] sm:$0xff] %v836
    %901 = vst [vmem:[#allocation10 + $0x80] sm:$0xff] %v837
    %902 = vst [vmem:[#allocation10 + $0x88] sm:$0xff] %v838
    %903 = vst [vmem:[#allocation10 + $0x90] sm:$0xff] %v839
    %904 = vst [vmem:[#allocation10 + $0x98] sm:$0xff] %v840
    %905 = vst [vmem:[#allocation10 + $0xa0] sm:$0xff] %v841
    %906 = vst [vmem:[#allocation10 + $0xa8] sm:$0xff] %v842
    %907 = vst [vmem:[#allocation10 + $0xb0] sm:$0xff] %v843
    %908 = vst [vmem:[#allocation10 + $0xb8] sm:$0xff] %v844
    %909 = vst [vmem:[#allocation10 + $0xc0] sm:$0xff] %v845
    %910 = vst [vmem:[#allocation10 + $0xc8] sm:$0xff] %v846
    %911 = vst [vmem:[#allocation10 + $0xd0] sm:$0xff] %v847
    %912 = vst [vmem:[#allocation10 + $0xd8] sm:$0xff] %v848
    %913 = vst [vmem:[#allocation10 + $0xe0] sm:$0xff] %v849
    %914 = vst [vmem:[#allocation10 + $0xe8] sm:$0xff] %v850
    %915 = vst [vmem:[#allocation10 + $0xf0] sm:$0xff] %v851
    %916 = vst [vmem:[#allocation10 + $0xf8] sm:$0xff] %v852
    %917 = vst [vmem:[#allocation10 + $0x100] sm:$0xff] %v853
    %918 = vst [vmem:[#allocation10 + $0x108] sm:$0xff] %v854
    %919 = vst [vmem:[#allocation10 + $0x110] sm:$0xff] %v855
    %920 = vst [vmem:[#allocation10 + $0x118] sm:$0xff] %v856
    %921 = vst [vmem:[#allocation10 + $0x120] sm:$0xff] %v857
    %922 = vst [vmem:[#allocation10 + $0x128] sm:$0xff] %v858
    %923 = vst [vmem:[#allocation10 + $0x130] sm:$0xff] %v859
    %924 = vst [vmem:[#allocation10 + $0x138] sm:$0xff] %v860
    %925 = vst [vmem:[#allocation10 + $0x140] sm:$0xff] %v861
    %926 = vst [vmem:[#allocation10 + $0x148] sm:$0xff] %v862
    %927 = vst [vmem:[#allocation10 + $0x150] sm:$0xff] %v863
    %928 = vst [vmem:[#allocation10 + $0x158] sm:$0xff] %v864
    %929 = vst [vmem:[#allocation10 + $0x160] sm:$0xff] %v865
    %930 = vst [vmem:[#allocation10 + $0x168] sm:$0xff] %v866
    %931 = vst [vmem:[#allocation10 + $0x170] sm:$0xff] %v867
    %932 = vst [vmem:[#allocation10 + $0x178] sm:$0xff] %v868
    %933 = vst [vmem:[#allocation10 + $0x180] sm:$0xff] %v869
    %934 = vst [vmem:[#allocation10 + $0x188] sm:$0xff] %v870
    %935 = vst [vmem:[#allocation10 + $0x190] sm:$0xff] %v871
    %936 = vst [vmem:[#allocation10 + $0x198] sm:$0xff] %v872
    %937 = vst [vmem:[#allocation10 + $0x1a0] sm:$0xff] %v873
    %938 = vst [vmem:[#allocation10 + $0x1a8] sm:$0xff] %v874
    %939 = vst [vmem:[#allocation10 + $0x1b0] sm:$0xff] %v875
    %940 = vst [vmem:[#allocation10 + $0x1b8] sm:$0xff] %v876
    %941 = vst [vmem:[#allocation10 + $0x1c0] sm:$0xff] %v877
    %942 = vst [vmem:[#allocation10 + $0x1c8] sm:$0xff] %v878
    %943 = vst [vmem:[#allocation10 + $0x1d0] sm:$0xff] %v879
    %944 = vst [vmem:[#allocation10 + $0x1d8] sm:$0xff] %v880
    %945 = vst [vmem:[#allocation10 + $0x1e0] sm:$0xff] %v881
    %946 = vst [vmem:[#allocation10 + $0x1e8] sm:$0xff] %v882
    %947 = vst [vmem:[#allocation10 + $0x1f0] sm:$0xff] %v883
    %948 = vst [vmem:[#allocation10 + $0x1f8] sm:$0xff] %v884
    // Predicated region
    $region34: #{_deform_conv_forward.3} parent=1 // pred_check
      _
    $region35: #{_deform_conv_forward.3} parent=1 // pred_check_branch
      %950 = sbr.rel (0) target = $region37
    $region36: #{_deform_conv_forward.3} parent=1 // pred_region
      %s952 = ssub.s32 8192, 8192
      %953 = vsyncadd [#allocation4], %s952
      %s954 = sshll.u32 [#allocation10], 4
      %s955 = int_to_ptr.vmem [resolvable:$true] %s954
      %960 = dma.vmem_to_hbm [thread:$0]  %s955, 8192, %s4, [#allocation4], 128, 128, 8
    $region37: #{_deform_conv_forward.3} parent=1 // pred_fallthru
      _
    // Predicated region
    $region38: #{_deform_conv_forward.3} parent=1 // pred_check
      _
    $region39: #{_deform_conv_forward.3} parent=1 // pred_check_branch
      %962 = sbr.rel (0) target = $region41
    $region40: #{_deform_conv_forward.3} parent=1 // pred_region
      %963 = dma.done [#allocation4], 8192
    $region41: #{_deform_conv_forward.3} parent=1 // pred_fallthru
      _
    %964 = vsyncpa [#allocation3], 1
    %965 = vsyncpa [#allocation6], 1
    %966 = vsyncpa [#allocation9], 1
    %967 = vsyncpa [#allocation4], 1

</llo_original>
